<compile_context>
chip_gen: v5e
topology: v5e:2x2
jax: 0.10.0
libtpu: 0.0.40
codegen_flags: <defaults>
</compile_context>

<pallas_src>
import jax
import jax.numpy as jnp
from jax.experimental import pallas as pl
from jax.experimental.pallas import tpu as pltpu

_LANES = 128


def _round_up(x, m):
    return (x + m - 1) // m * m


def _write_scores(t_buf, c_buf, logits_ref):
    """Vectorized epilogue: (TB, S) dot-product scores -> lane-dense store."""
    TB, _ = t_buf.shape
    S = c_buf.shape[0]
    LP = logits_ref.shape[1]
    t = t_buf[...].astype(jnp.float32)                          # (TB, E)
    cols = [jnp.sum(c_buf[s].astype(jnp.float32) * t, axis=-1, keepdims=True)
            for s in range(S)]                                  # S x (TB, 1)
    scores = jnp.concatenate(cols, axis=1)                      # (TB, S)
    if LP > S:                                                  # pad to lane-dense
        scores = jnp.concatenate(
            [scores, jnp.zeros((TB, LP - S), jnp.float32)], axis=1)
    logits_ref[...] = scores


def _sg_vmem_kernel(tgt_sm, ctxneg_sm, w_ref, c_ref, logits_ref, t_buf, c_buf):
    """VMEM-resident-table path.

    tgt_sm    : SMEM (Bp,)     int32  target indices              (scalar prefetch)
    ctxneg_sm : SMEM (Bp*S,)   int32  flattened [context|negs]    (scalar prefetch)
    w_ref     : VMEM (V, E)           target table (resident, constant block)
    c_ref     : VMEM (V, E)           context table (resident, constant block)
    logits_ref: VMEM (TB, LP)  f32    lane-padded logits block (cols >= S are 0)
    t_buf     : VMEM (TB, E)          gathered target rows
    c_buf     : VMEM (S, TB, E)       gathered context/negative rows
    """
    i = pl.program_id(0)
    TB, _ = t_buf.shape
    S = c_buf.shape[0]
    base = i * TB

    def gather_row(r, carry):
        g = base + r
        # In-VMEM dynamic row gathers (dynamic start on the sublane dim).
        t_buf[pl.ds(r, 1), :] = w_ref[pl.ds(tgt_sm[g], 1), :]
        for s in range(S):
            c_buf[s, pl.ds(r, 1), :] = c_ref[pl.ds(ctxneg_sm[g * S + s], 1), :]
        return carry

    jax.lax.fori_loop(0, TB, gather_row, 0, unroll=min(TB, 8))
    _write_scores(t_buf, c_buf, logits_ref)


def _sg_hbm_kernel(tgt_sm, ctxneg_sm, w_hbm, c_hbm, logits_ref,
                   t_buf, c_buf, sem_t, sem_c):
    """Large-vocab fallback: row-gather DMAs straight from the HBM tables."""
    i = pl.program_id(0)
    TB, _ = t_buf.shape
    S = c_buf.shape[0]
    base = i * TB

    # Issue every row gather for this tile against ONE shared DMA semaphore per
    # destination buffer.  Pad rows (index 0, a valid table row) are still
    # gathered so the byte-counted single wait below stays exact.
    def issue_row(r, carry):
        g = base + r
        pltpu.make_async_copy(
            w_hbm.at[pl.ds(tgt_sm[g], 1)],            # (1, E) row of W
            t_buf.at[pl.ds(r, 1)],                    # (1, E) slot
            sem_t).start()
        for s in range(S):
            pltpu.make_async_copy(
                c_hbm.at[pl.ds(ctxneg_sm[g * S + s], 1)],
                c_buf.at[s, pl.ds(r, 1)],
                sem_c).start()
        return carry

    jax.lax.fori_loop(0, TB, issue_row, 0, unroll=min(TB, 8))

    # DMA semaphores count bytes: one wait sized to the full destination buffer
    # covers all of the row copies issued above (1 wait per buffer vs TB*(S+1)).
    pltpu.make_async_copy(t_buf, t_buf, sem_t).wait()
    pltpu.make_async_copy(c_buf, c_buf, sem_c).wait()

    # TODO(synk): double-buffer t_buf/c_buf across grid steps so tile i+1's
    # gathers overlap tile i's (tiny) compute for huge vocabularies.
    _write_scores(t_buf, c_buf, logits_ref)


def sg_forward(W, C, target, context, neg_samples, *, batch_tile=None):
    """Pallas implementation of SG.forward.

    W, C        : (V, E) float32 embedding tables
    target      : (B,)   int indices
    context     : (B,)   int indices
    neg_samples : (B, K) int indices
    Returns (logits, labels), each (B, 1+K) float32.
    """
    V, E = W.shape
    B = target.shape[0]
    K = neg_samples.shape[1]
    S = K + 1
    LP = _round_up(S, _LANES)                       # lane-dense output width

    # ---- TPU-generation-aware decision: keep tables VMEM-resident? ----------
    try:
        phys_vmem = int(pltpu.get_tpu_info().vmem_capacity_bytes)
    except Exception:
        phys_vmem = 64 * 1024 * 1024                # v7x floor (v5e/v6e: 128 MiB)
    table_bytes = V * E * W.dtype.itemsize + V * E * C.dtype.itemsize
    # Full-extent blocks are double-buffered by the pipeline; keep 2x the table
    # bytes under ~half of physical VMEM so scratch/output still fit.
    use_vmem_tables = 2 * table_bytes <= phys_vmem // 2

    # ---- batch tiling --------------------------------------------------------
    if batch_tile is None:
        bp8 = _round_up(B, 8)
        batch_tile = min(256, bp8)                  # amortize per-step overhead
        if bp8 // batch_tile < 2 and bp8 >= 16:     # >=2 tiles -> both v7x cores
            batch_tile = _round_up(bp8 // 2, 8)
    batch_tile = max(8, _round_up(batch_tile, 8))

    tgt = target.astype(jnp.int32)
    ctxneg = jnp.concatenate(
        [context.astype(jnp.int32)[:, None], neg_samples.astype(jnp.int32)],
        axis=1)                                     # (B, S): slot 0 = context

    pad = (-B) % batch_tile
    if pad:                                         # pad index 0 is a valid row
        tgt = jnp.pad(tgt, (0, pad))
        ctxneg = jnp.pad(ctxneg, ((0, pad), (0, 0)))
    Bp = B + pad
    grid = (Bp // batch_tile,)
    # Flatten to 1-D for SMEM scalar prefetch: a 2-D SMEM array pads its last
    # dim to 128 lanes; 1-D only pads to the next power of two.
    ctxneg_flat = ctxneg.reshape(Bp * S)

    if use_vmem_tables:
        kernel = _sg_vmem_kernel
        in_specs = [
            # Full-extent block + constant index_map: DMA'd into VMEM once and
            # kept resident for the whole grid; rows gathered with VMEM loads.
            pl.BlockSpec((V, E), lambda i, *_: (0, 0)),   # W
            pl.BlockSpec((V, E), lambda i, *_: (0, 0)),   # C
        ]
        scratch_shapes = [
            pltpu.VMEM((batch_tile, E), W.dtype),
            pltpu.VMEM((S, batch_tile, E), C.dtype),
        ]
        vmem_limit = int(min(phys_vmem - (4 << 20),
                             max(32 << 20, 2 * table_bytes + (16 << 20))))
    else:
        kernel = _sg_hbm_kernel
        in_specs = [
            pl.BlockSpec(memory_space=pl.ANY),      # W stays in HBM; rows DMA'd
            pl.BlockSpec(memory_space=pl.ANY),      # C stays in HBM; rows DMA'd
        ]
        scratch_shapes = [
            pltpu.VMEM((batch_tile, E), W.dtype),
            pltpu.VMEM((S, batch_tile, E), C.dtype),
            pltpu.SemaphoreType.DMA,                # shared sem for target rows
            pltpu.SemaphoreType.DMA,                # shared sem for ctx/neg rows
        ]
        vmem_limit = 32 << 20

    logits_padded = pl.pallas_call(
        kernel,
        out_shape=jax.ShapeDtypeStruct((Bp, LP), jnp.float32),
        grid_spec=pltpu.PrefetchScalarGridSpec(
            num_scalar_prefetch=2,                  # tgt, ctxneg_flat -> SMEM
            grid=grid,
            in_specs=in_specs,
            out_specs=pl.BlockSpec((batch_tile, LP), lambda i, *_: (i, 0)),
            scratch_shapes=scratch_shapes,
        ),
        compiler_params=pltpu.CompilerParams(
            # Independent batch tiles: shard across TensorCores on v7x.
            dimension_semantics=("parallel",),
            vmem_limit_bytes=vmem_limit,
        ),
    )(tgt, ctxneg_flat, W, C)

    logits = logits_padded[:B, :S]
    # labels are a data-independent constant: build in the wrapper, not in the
    # kernel (saves an output DMA + vector stores).
    labels = jnp.concatenate(
        [jnp.ones((B, 1), jnp.float32), jnp.zeros((B, K), jnp.float32)], axis=1)
    return logits, labels


if __name__ == "__main__":
    vocab_size = 64
    embed_size = 128
    batch = 16
    num_neg = 5

    key = jax.random.PRNGKey(0)
    k_w, k_c, k_t, k_ctx, k_neg = jax.random.split(key, 5)

    # Deterministic "nn.Embedding" weights (synthetic init, not a checkpoint).
    W = jax.random.normal(k_w, (vocab_size, embed_size), dtype=jnp.float32)
    C = jax.random.normal(k_c, (vocab_size, embed_size), dtype=jnp.float32)

    target = jax.random.randint(k_t, (batch,), 0, vocab_size, dtype=jnp.int32)
    context = jax.random.randint(k_ctx, (batch,), 0, vocab_size, dtype=jnp.int32)
    neg_samples = jax.random.randint(
        k_neg, (batch, num_neg), 0, vocab_size, dtype=jnp.int32)

    logits, labels = jax.jit(sg_forward)(W, C, target, context, neg_samples)
    jax.block_until_ready((logits, labels))

    # Pure-JAX reference check of the forward semantics.
    t_e = W[target]
    c_e = C[context]
    n_e = C[neg_samples]
    pos_ref = jnp.sum(t_e * c_e, axis=1)
    neg_ref = jnp.einsum("bke,be->bk", n_e, t_e)
    logits_ref = jnp.concatenate([pos_ref[:, None], neg_ref], axis=1)
    labels_ref = jnp.concatenate(
        [jnp.ones((batch, 1)), jnp.zeros((batch, num_neg))], axis=1)

    assert logits.shape == (batch, 1 + num_neg)
    assert labels.shape == (batch, 1 + num_neg)
    assert jnp.allclose(logits, logits_ref, atol=1e-4)
    assert jnp.allclose(labels, labels_ref)

    print("KERNEL_OK")
</pallas_src>

<mosaic_0001>
module attributes {stable_mosaic.version = 11 : i64} {
  func.func @_sg_vmem_kernel(%arg0: i32, %arg1: memref<16xi32, #tpu.memory_space<smem>>, %arg2: memref<96xi32, #tpu.memory_space<smem>>, %arg3: memref<64x128xf32, #tpu.memory_space<vmem>>, %arg4: memref<64x128xf32, #tpu.memory_space<vmem>>, %arg5: memref<8x128xf32, #tpu.memory_space<vmem>>, %arg6: memref<8x128xf32, #tpu.memory_space<vmem>>, %arg7: memref<6x8x128xf32, #tpu.memory_space<vmem>>) attributes {dimension_semantics = [#tpu.dimension_semantics<parallel>], iteration_bounds = array<i64: 2>, scalar_prefetch = 2 : i64, scratch_operands = 2 : i64, tpu.core_type = #tpu.core_type<tc>, window_params = [{pipeline_mode = #tpu.pipeline_mode<synchronous>, transform_indices = @transform_0, window_bounds = array<i64: 64, 128>}, {pipeline_mode = #tpu.pipeline_mode<synchronous>, transform_indices = @transform_1, window_bounds = array<i64: 64, 128>}, {transform_indices = @transform_2, window_bounds = array<i64: 8, 128>}]} {
    %c8_i32 = arith.constant 8 : i32
    %0 = arith.muli %arg0, %c8_i32 : i32
    %c0_i32 = arith.constant 0 : i32
    %1 = arith.addi %0, %c0_i32 : i32
    %2 = arith.index_cast %1 : i32 to index
    %3 = memref.load %arg1[%2] : memref<16xi32, #tpu.memory_space<smem>>
    %4 = arith.index_cast %3 : i32 to index
    %c0 = arith.constant 0 : index
    %5 = vector.load %arg3[%4, %c0] : memref<64x128xf32, #tpu.memory_space<vmem>>, vector<1x128xf32>
    %6 = arith.index_cast %c0_i32 : i32 to index
    %c0_0 = arith.constant 0 : index
    %7 = vector.load %arg6[%6, %c0_0] : memref<8x128xf32, #tpu.memory_space<vmem>>, vector<1x128xf32>
    tpu.vector_store %arg6[%6, %c0_0], %5 {strides = array<i32>} : memref<8x128xf32, #tpu.memory_space<vmem>>, vector<1x128xf32>,
    %c6_i32 = arith.constant 6 : i32
    %8 = arith.muli %1, %c6_i32 : i32
    %c0_i32_1 = arith.constant 0 : i32
    %9 = arith.addi %8, %c0_i32_1 : i32
    %10 = arith.index_cast %9 : i32 to index
    %11 = memref.load %arg2[%10] : memref<96xi32, #tpu.memory_space<smem>>
    %12 = arith.index_cast %11 : i32 to index
    %c0_2 = arith.constant 0 : index
    %13 = vector.load %arg4[%12, %c0_2] : memref<64x128xf32, #tpu.memory_space<vmem>>, vector<1x128xf32>
    %c0_3 = arith.constant 0 : index
    %14 = arith.index_cast %c0_i32 : i32 to index
    %c0_4 = arith.constant 0 : index
    %15 = vector.load %arg7[%c0_3, %14, %c0_4] : memref<6x8x128xf32, #tpu.memory_space<vmem>>, vector<1x1x128xf32>
    %16 = vector.shape_cast %15 : vector<1x1x128xf32> to vector<1x128xf32>
    %17 = vector.shape_cast %13 : vector<1x128xf32> to vector<1x1x128xf32>
    tpu.vector_store %arg7[%c0_3, %14, %c0_4], %17 {strides = array<i32>} : memref<6x8x128xf32, #tpu.memory_space<vmem>>, vector<1x1x128xf32>,
    %c6_i32_5 = arith.constant 6 : i32
    %18 = arith.muli %1, %c6_i32_5 : i32
    %c1_i32 = arith.constant 1 : i32
    %19 = arith.addi %18, %c1_i32 : i32
    %20 = arith.index_cast %19 : i32 to index
    %21 = memref.load %arg2[%20] : memref<96xi32, #tpu.memory_space<smem>>
    %22 = arith.index_cast %21 : i32 to index
    %c0_6 = arith.constant 0 : index
    %23 = vector.load %arg4[%22, %c0_6] : memref<64x128xf32, #tpu.memory_space<vmem>>, vector<1x128xf32>
    %c1 = arith.constant 1 : index
    %24 = arith.index_cast %c0_i32 : i32 to index
    %c0_7 = arith.constant 0 : index
    %25 = vector.load %arg7[%c1, %24, %c0_7] : memref<6x8x128xf32, #tpu.memory_space<vmem>>, vector<1x1x128xf32>
    %26 = vector.shape_cast %25 : vector<1x1x128xf32> to vector<1x128xf32>
    %27 = vector.shape_cast %23 : vector<1x128xf32> to vector<1x1x128xf32>
    tpu.vector_store %arg7[%c1, %24, %c0_7], %27 {strides = array<i32>} : memref<6x8x128xf32, #tpu.memory_space<vmem>>, vector<1x1x128xf32>,
    %c6_i32_8 = arith.constant 6 : i32
    %28 = arith.muli %1, %c6_i32_8 : i32
    %c2_i32 = arith.constant 2 : i32
    %29 = arith.addi %28, %c2_i32 : i32
    %30 = arith.index_cast %29 : i32 to index
    %31 = memref.load %arg2[%30] : memref<96xi32, #tpu.memory_space<smem>>
    %32 = arith.index_cast %31 : i32 to index
    %c0_9 = arith.constant 0 : index
    %33 = vector.load %arg4[%32, %c0_9] : memref<64x128xf32, #tpu.memory_space<vmem>>, vector<1x128xf32>
    %c2 = arith.constant 2 : index
    %34 = arith.index_cast %c0_i32 : i32 to index
    %c0_10 = arith.constant 0 : index
    %35 = vector.load %arg7[%c2, %34, %c0_10] : memref<6x8x128xf32, #tpu.memory_space<vmem>>, vector<1x1x128xf32>
    %36 = vector.shape_cast %35 : vector<1x1x128xf32> to vector<1x128xf32>
    %37 = vector.shape_cast %33 : vector<1x128xf32> to vector<1x1x128xf32>
    tpu.vector_store %arg7[%c2, %34, %c0_10], %37 {strides = array<i32>} : memref<6x8x128xf32, #tpu.memory_space<vmem>>, vector<1x1x128xf32>,
    %c6_i32_11 = arith.constant 6 : i32
    %38 = arith.muli %1, %c6_i32_11 : i32
    %c3_i32 = arith.constant 3 : i32
    %39 = arith.addi %38, %c3_i32 : i32
    %40 = arith.index_cast %39 : i32 to index
    %41 = memref.load %arg2[%40] : memref<96xi32, #tpu.memory_space<smem>>
    %42 = arith.index_cast %41 : i32 to index
    %c0_12 = arith.constant 0 : index
    %43 = vector.load %arg4[%42, %c0_12] : memref<64x128xf32, #tpu.memory_space<vmem>>, vector<1x128xf32>
    %c3 = arith.constant 3 : index
    %44 = arith.index_cast %c0_i32 : i32 to index
    %c0_13 = arith.constant 0 : index
    %45 = vector.load %arg7[%c3, %44, %c0_13] : memref<6x8x128xf32, #tpu.memory_space<vmem>>, vector<1x1x128xf32>
    %46 = vector.shape_cast %45 : vector<1x1x128xf32> to vector<1x128xf32>
    %47 = vector.shape_cast %43 : vector<1x128xf32> to vector<1x1x128xf32>
    tpu.vector_store %arg7[%c3, %44, %c0_13], %47 {strides = array<i32>} : memref<6x8x128xf32, #tpu.memory_space<vmem>>, vector<1x1x128xf32>,
    %c6_i32_14 = arith.constant 6 : i32
    %48 = arith.muli %1, %c6_i32_14 : i32
    %c4_i32 = arith.constant 4 : i32
    %49 = arith.addi %48, %c4_i32 : i32
    %50 = arith.index_cast %49 : i32 to index
    %51 = memref.load %arg2[%50] : memref<96xi32, #tpu.memory_space<smem>>
    %52 = arith.index_cast %51 : i32 to index
    %c0_15 = arith.constant 0 : index
    %53 = vector.load %arg4[%52, %c0_15] : memref<64x128xf32, #tpu.memory_space<vmem>>, vector<1x128xf32>
    %c4 = arith.constant 4 : index
    %54 = arith.index_cast %c0_i32 : i32 to index
    %c0_16 = arith.constant 0 : index
    %55 = vector.load %arg7[%c4, %54, %c0_16] : memref<6x8x128xf32, #tpu.memory_space<vmem>>, vector<1x1x128xf32>
    %56 = vector.shape_cast %55 : vector<1x1x128xf32> to vector<1x128xf32>
    %57 = vector.shape_cast %53 : vector<1x128xf32> to vector<1x1x128xf32>
    tpu.vector_store %arg7[%c4, %54, %c0_16], %57 {strides = array<i32>} : memref<6x8x128xf32, #tpu.memory_space<vmem>>, vector<1x1x128xf32>,
    %c6_i32_17 = arith.constant 6 : i32
    %58 = arith.muli %1, %c6_i32_17 : i32
    %c5_i32 = arith.constant 5 : i32
    %59 = arith.addi %58, %c5_i32 : i32
    %60 = arith.index_cast %59 : i32 to index
    %61 = memref.load %arg2[%60] : memref<96xi32, #tpu.memory_space<smem>>
    %62 = arith.index_cast %61 : i32 to index
    %c0_18 = arith.constant 0 : index
    %63 = vector.load %arg4[%62, %c0_18] : memref<64x128xf32, #tpu.memory_space<vmem>>, vector<1x128xf32>
    %c5 = arith.constant 5 : index
    %64 = arith.index_cast %c0_i32 : i32 to index
    %c0_19 = arith.constant 0 : index
    %65 = vector.load %arg7[%c5, %64, %c0_19] : memref<6x8x128xf32, #tpu.memory_space<vmem>>, vector<1x1x128xf32>
    %66 = vector.shape_cast %65 : vector<1x1x128xf32> to vector<1x128xf32>
    %67 = vector.shape_cast %63 : vector<1x128xf32> to vector<1x1x128xf32>
    tpu.vector_store %arg7[%c5, %64, %c0_19], %67 {strides = array<i32>} : memref<6x8x128xf32, #tpu.memory_space<vmem>>, vector<1x1x128xf32>,
    %c1_i32_20 = arith.constant 1 : i32
    %68 = arith.addi %0, %c1_i32_20 : i32
    %69 = arith.index_cast %68 : i32 to index
    %70 = memref.load %arg1[%69] : memref<16xi32, #tpu.memory_space<smem>>
    %71 = arith.index_cast %70 : i32 to index
    %c0_21 = arith.constant 0 : index
    %72 = vector.load %arg3[%71, %c0_21] : memref<64x128xf32, #tpu.memory_space<vmem>>, vector<1x128xf32>
    %73 = arith.index_cast %c1_i32_20 : i32 to index
    %c0_22 = arith.constant 0 : index
    %74 = vector.load %arg6[%73, %c0_22] : memref<8x128xf32, #tpu.memory_space<vmem>>, vector<1x128xf32>
    tpu.vector_store %arg6[%73, %c0_22], %72 {strides = array<i32>} : memref<8x128xf32, #tpu.memory_space<vmem>>, vector<1x128xf32>,
    %c6_i32_23 = arith.constant 6 : i32
    %75 = arith.muli %68, %c6_i32_23 : i32
    %c0_i32_24 = arith.constant 0 : i32
    %76 = arith.addi %75, %c0_i32_24 : i32
    %77 = arith.index_cast %76 : i32 to index
    %78 = memref.load %arg2[%77] : memref<96xi32, #tpu.memory_space<smem>>
    %79 = arith.index_cast %78 : i32 to index
    %c0_25 = arith.constant 0 : index
    %80 = vector.load %arg4[%79, %c0_25] : memref<64x128xf32, #tpu.memory_space<vmem>>, vector<1x128xf32>
    %c0_26 = arith.constant 0 : index
    %81 = arith.index_cast %c1_i32_20 : i32 to index
    %c0_27 = arith.constant 0 : index
    %82 = vector.load %arg7[%c0_26, %81, %c0_27] : memref<6x8x128xf32, #tpu.memory_space<vmem>>, vector<1x1x128xf32>
    %83 = vector.shape_cast %82 : vector<1x1x128xf32> to vector<1x128xf32>
    %84 = vector.shape_cast %80 : vector<1x128xf32> to vector<1x1x128xf32>
    tpu.vector_store %arg7[%c0_26, %81, %c0_27], %84 {strides = array<i32>} : memref<6x8x128xf32, #tpu.memory_space<vmem>>, vector<1x1x128xf32>,
    %c6_i32_28 = arith.constant 6 : i32
    %85 = arith.muli %68, %c6_i32_28 : i32
    %c1_i32_29 = arith.constant 1 : i32
    %86 = arith.addi %85, %c1_i32_29 : i32
    %87 = arith.index_cast %86 : i32 to index
    %88 = memref.load %arg2[%87] : memref<96xi32, #tpu.memory_space<smem>>
    %89 = arith.index_cast %88 : i32 to index
    %c0_30 = arith.constant 0 : index
    %90 = vector.load %arg4[%89, %c0_30] : memref<64x128xf32, #tpu.memory_space<vmem>>, vector<1x128xf32>
    %c1_31 = arith.constant 1 : index
    %91 = arith.index_cast %c1_i32_20 : i32 to index
    %c0_32 = arith.constant 0 : index
    %92 = vector.load %arg7[%c1_31, %91, %c0_32] : memref<6x8x128xf32, #tpu.memory_space<vmem>>, vector<1x1x128xf32>
    %93 = vector.shape_cast %92 : vector<1x1x128xf32> to vector<1x128xf32>
    %94 = vector.shape_cast %90 : vector<1x128xf32> to vector<1x1x128xf32>
    tpu.vector_store %arg7[%c1_31, %91, %c0_32], %94 {strides = array<i32>} : memref<6x8x128xf32, #tpu.memory_space<vmem>>, vector<1x1x128xf32>,
    %c6_i32_33 = arith.constant 6 : i32
    %95 = arith.muli %68, %c6_i32_33 : i32
    %c2_i32_34 = arith.constant 2 : i32
    %96 = arith.addi %95, %c2_i32_34 : i32
    %97 = arith.index_cast %96 : i32 to index
    %98 = memref.load %arg2[%97] : memref<96xi32, #tpu.memory_space<smem>>
    %99 = arith.index_cast %98 : i32 to index
    %c0_35 = arith.constant 0 : index
    %100 = vector.load %arg4[%99, %c0_35] : memref<64x128xf32, #tpu.memory_space<vmem>>, vector<1x128xf32>
    %c2_36 = arith.constant 2 : index
    %101 = arith.index_cast %c1_i32_20 : i32 to index
    %c0_37 = arith.constant 0 : index
    %102 = vector.load %arg7[%c2_36, %101, %c0_37] : memref<6x8x128xf32, #tpu.memory_space<vmem>>, vector<1x1x128xf32>
    %103 = vector.shape_cast %102 : vector<1x1x128xf32> to vector<1x128xf32>
    %104 = vector.shape_cast %100 : vector<1x128xf32> to vector<1x1x128xf32>
    tpu.vector_store %arg7[%c2_36, %101, %c0_37], %104 {strides = array<i32>} : memref<6x8x128xf32, #tpu.memory_space<vmem>>, vector<1x1x128xf32>,
    %c6_i32_38 = arith.constant 6 : i32
    %105 = arith.muli %68, %c6_i32_38 : i32
    %c3_i32_39 = arith.constant 3 : i32
    %106 = arith.addi %105, %c3_i32_39 : i32
    %107 = arith.index_cast %106 : i32 to index
    %108 = memref.load %arg2[%107] : memref<96xi32, #tpu.memory_space<smem>>
    %109 = arith.index_cast %108 : i32 to index
    %c0_40 = arith.constant 0 : index
    %110 = vector.load %arg4[%109, %c0_40] : memref<64x128xf32, #tpu.memory_space<vmem>>, vector<1x128xf32>
    %c3_41 = arith.constant 3 : index
    %111 = arith.index_cast %c1_i32_20 : i32 to index
    %c0_42 = arith.constant 0 : index
    %112 = vector.load %arg7[%c3_41, %111, %c0_42] : memref<6x8x128xf32, #tpu.memory_space<vmem>>, vector<1x1x128xf32>
    %113 = vector.shape_cast %112 : vector<1x1x128xf32> to vector<1x128xf32>
    %114 = vector.shape_cast %110 : vector<1x128xf32> to vector<1x1x128xf32>
    tpu.vector_store %arg7[%c3_41, %111, %c0_42], %114 {strides = array<i32>} : memref<6x8x128xf32, #tpu.memory_space<vmem>>, vector<1x1x128xf32>,
    %c6_i32_43 = arith.constant 6 : i32
    %115 = arith.muli %68, %c6_i32_43 : i32
    %c4_i32_44 = arith.constant 4 : i32
    %116 = arith.addi %115, %c4_i32_44 : i32
    %117 = arith.index_cast %116 : i32 to index
    %118 = memref.load %arg2[%117] : memref<96xi32, #tpu.memory_space<smem>>
    %119 = arith.index_cast %118 : i32 to index
    %c0_45 = arith.constant 0 : index
    %120 = vector.load %arg4[%119, %c0_45] : memref<64x128xf32, #tpu.memory_space<vmem>>, vector<1x128xf32>
    %c4_46 = arith.constant 4 : index
    %121 = arith.index_cast %c1_i32_20 : i32 to index
    %c0_47 = arith.constant 0 : index
    %122 = vector.load %arg7[%c4_46, %121, %c0_47] : memref<6x8x128xf32, #tpu.memory_space<vmem>>, vector<1x1x128xf32>
    %123 = vector.shape_cast %122 : vector<1x1x128xf32> to vector<1x128xf32>
    %124 = vector.shape_cast %120 : vector<1x128xf32> to vector<1x1x128xf32>
    tpu.vector_store %arg7[%c4_46, %121, %c0_47], %124 {strides = array<i32>} : memref<6x8x128xf32, #tpu.memory_space<vmem>>, vector<1x1x128xf32>,
    %c6_i32_48 = arith.constant 6 : i32
    %125 = arith.muli %68, %c6_i32_48 : i32
    %c5_i32_49 = arith.constant 5 : i32
    %126 = arith.addi %125, %c5_i32_49 : i32
    %127 = arith.index_cast %126 : i32 to index
    %128 = memref.load %arg2[%127] : memref<96xi32, #tpu.memory_space<smem>>
    %129 = arith.index_cast %128 : i32 to index
    %c0_50 = arith.constant 0 : index
    %130 = vector.load %arg4[%129, %c0_50] : memref<64x128xf32, #tpu.memory_space<vmem>>, vector<1x128xf32>
    %c5_51 = arith.constant 5 : index
    %131 = arith.index_cast %c1_i32_20 : i32 to index
    %c0_52 = arith.constant 0 : index
    %132 = vector.load %arg7[%c5_51, %131, %c0_52] : memref<6x8x128xf32, #tpu.memory_space<vmem>>, vector<1x1x128xf32>
    %133 = vector.shape_cast %132 : vector<1x1x128xf32> to vector<1x128xf32>
    %134 = vector.shape_cast %130 : vector<1x128xf32> to vector<1x1x128xf32>
    tpu.vector_store %arg7[%c5_51, %131, %c0_52], %134 {strides = array<i32>} : memref<6x8x128xf32, #tpu.memory_space<vmem>>, vector<1x1x128xf32>,
    %c2_i32_53 = arith.constant 2 : i32
    %135 = arith.addi %0, %c2_i32_53 : i32
    %136 = arith.index_cast %135 : i32 to index
    %137 = memref.load %arg1[%136] : memref<16xi32, #tpu.memory_space<smem>>
    %138 = arith.index_cast %137 : i32 to index
    %c0_54 = arith.constant 0 : index
    %139 = vector.load %arg3[%138, %c0_54] : memref<64x128xf32, #tpu.memory_space<vmem>>, vector<1x128xf32>
    %140 = arith.index_cast %c2_i32_53 : i32 to index
    %c0_55 = arith.constant 0 : index
    %141 = vector.load %arg6[%140, %c0_55] : memref<8x128xf32, #tpu.memory_space<vmem>>, vector<1x128xf32>
    tpu.vector_store %arg6[%140, %c0_55], %139 {strides = array<i32>} : memref<8x128xf32, #tpu.memory_space<vmem>>, vector<1x128xf32>,
    %c6_i32_56 = arith.constant 6 : i32
    %142 = arith.muli %135, %c6_i32_56 : i32
    %c0_i32_57 = arith.constant 0 : i32
    %143 = arith.addi %142, %c0_i32_57 : i32
    %144 = arith.index_cast %143 : i32 to index
    %145 = memref.load %arg2[%144] : memref<96xi32, #tpu.memory_space<smem>>
    %146 = arith.index_cast %145 : i32 to index
    %c0_58 = arith.constant 0 : index
    %147 = vector.load %arg4[%146, %c0_58] : memref<64x128xf32, #tpu.memory_space<vmem>>, vector<1x128xf32>
    %c0_59 = arith.constant 0 : index
    %148 = arith.index_cast %c2_i32_53 : i32 to index
    %c0_60 = arith.constant 0 : index
    %149 = vector.load %arg7[%c0_59, %148, %c0_60] : memref<6x8x128xf32, #tpu.memory_space<vmem>>, vector<1x1x128xf32>
    %150 = vector.shape_cast %149 : vector<1x1x128xf32> to vector<1x128xf32>
    %151 = vector.shape_cast %147 : vector<1x128xf32> to vector<1x1x128xf32>
    tpu.vector_store %arg7[%c0_59, %148, %c0_60], %151 {strides = array<i32>} : memref<6x8x128xf32, #tpu.memory_space<vmem>>, vector<1x1x128xf32>,
    %c6_i32_61 = arith.constant 6 : i32
    %152 = arith.muli %135, %c6_i32_61 : i32
    %c1_i32_62 = arith.constant 1 : i32
    %153 = arith.addi %152, %c1_i32_62 : i32
    %154 = arith.index_cast %153 : i32 to index
    %155 = memref.load %arg2[%154] : memref<96xi32, #tpu.memory_space<smem>>
    %156 = arith.index_cast %155 : i32 to index
    %c0_63 = arith.constant 0 : index
    %157 = vector.load %arg4[%156, %c0_63] : memref<64x128xf32, #tpu.memory_space<vmem>>, vector<1x128xf32>
    %c1_64 = arith.constant 1 : index
    %158 = arith.index_cast %c2_i32_53 : i32 to index
    %c0_65 = arith.constant 0 : index
    %159 = vector.load %arg7[%c1_64, %158, %c0_65] : memref<6x8x128xf32, #tpu.memory_space<vmem>>, vector<1x1x128xf32>
    %160 = vector.shape_cast %159 : vector<1x1x128xf32> to vector<1x128xf32>
    %161 = vector.shape_cast %157 : vector<1x128xf32> to vector<1x1x128xf32>
    tpu.vector_store %arg7[%c1_64, %158, %c0_65], %161 {strides = array<i32>} : memref<6x8x128xf32, #tpu.memory_space<vmem>>, vector<1x1x128xf32>,
    %c6_i32_66 = arith.constant 6 : i32
    %162 = arith.muli %135, %c6_i32_66 : i32
    %c2_i32_67 = arith.constant 2 : i32
    %163 = arith.addi %162, %c2_i32_67 : i32
    %164 = arith.index_cast %163 : i32 to index
    %165 = memref.load %arg2[%164] : memref<96xi32, #tpu.memory_space<smem>>
    %166 = arith.index_cast %165 : i32 to index
    %c0_68 = arith.constant 0 : index
    %167 = vector.load %arg4[%166, %c0_68] : memref<64x128xf32, #tpu.memory_space<vmem>>, vector<1x128xf32>
    %c2_69 = arith.constant 2 : index
    %168 = arith.index_cast %c2_i32_53 : i32 to index
    %c0_70 = arith.constant 0 : index
    %169 = vector.load %arg7[%c2_69, %168, %c0_70] : memref<6x8x128xf32, #tpu.memory_space<vmem>>, vector<1x1x128xf32>
    %170 = vector.shape_cast %169 : vector<1x1x128xf32> to vector<1x128xf32>
    %171 = vector.shape_cast %167 : vector<1x128xf32> to vector<1x1x128xf32>
    tpu.vector_store %arg7[%c2_69, %168, %c0_70], %171 {strides = array<i32>} : memref<6x8x128xf32, #tpu.memory_space<vmem>>, vector<1x1x128xf32>,
    %c6_i32_71 = arith.constant 6 : i32
    %172 = arith.muli %135, %c6_i32_71 : i32
    %c3_i32_72 = arith.constant 3 : i32
    %173 = arith.addi %172, %c3_i32_72 : i32
    %174 = arith.index_cast %173 : i32 to index
    %175 = memref.load %arg2[%174] : memref<96xi32, #tpu.memory_space<smem>>
    %176 = arith.index_cast %175 : i32 to index
    %c0_73 = arith.constant 0 : index
    %177 = vector.load %arg4[%176, %c0_73] : memref<64x128xf32, #tpu.memory_space<vmem>>, vector<1x128xf32>
    %c3_74 = arith.constant 3 : index
    %178 = arith.index_cast %c2_i32_53 : i32 to index
    %c0_75 = arith.constant 0 : index
    %179 = vector.load %arg7[%c3_74, %178, %c0_75] : memref<6x8x128xf32, #tpu.memory_space<vmem>>, vector<1x1x128xf32>
    %180 = vector.shape_cast %179 : vector<1x1x128xf32> to vector<1x128xf32>
    %181 = vector.shape_cast %177 : vector<1x128xf32> to vector<1x1x128xf32>
    tpu.vector_store %arg7[%c3_74, %178, %c0_75], %181 {strides = array<i32>} : memref<6x8x128xf32, #tpu.memory_space<vmem>>, vector<1x1x128xf32>,
    %c6_i32_76 = arith.constant 6 : i32
    %182 = arith.muli %135, %c6_i32_76 : i32
    %c4_i32_77 = arith.constant 4 : i32
    %183 = arith.addi %182, %c4_i32_77 : i32
    %184 = arith.index_cast %183 : i32 to index
    %185 = memref.load %arg2[%184] : memref<96xi32, #tpu.memory_space<smem>>
    %186 = arith.index_cast %185 : i32 to index
    %c0_78 = arith.constant 0 : index
    %187 = vector.load %arg4[%186, %c0_78] : memref<64x128xf32, #tpu.memory_space<vmem>>, vector<1x128xf32>
    %c4_79 = arith.constant 4 : index
    %188 = arith.index_cast %c2_i32_53 : i32 to index
    %c0_80 = arith.constant 0 : index
    %189 = vector.load %arg7[%c4_79, %188, %c0_80] : memref<6x8x128xf32, #tpu.memory_space<vmem>>, vector<1x1x128xf32>
    %190 = vector.shape_cast %189 : vector<1x1x128xf32> to vector<1x128xf32>
    %191 = vector.shape_cast %187 : vector<1x128xf32> to vector<1x1x128xf32>
    tpu.vector_store %arg7[%c4_79, %188, %c0_80], %191 {strides = array<i32>} : memref<6x8x128xf32, #tpu.memory_space<vmem>>, vector<1x1x128xf32>,
    %c6_i32_81 = arith.constant 6 : i32
    %192 = arith.muli %135, %c6_i32_81 : i32
    %c5_i32_82 = arith.constant 5 : i32
    %193 = arith.addi %192, %c5_i32_82 : i32
    %194 = arith.index_cast %193 : i32 to index
    %195 = memref.load %arg2[%194] : memref<96xi32, #tpu.memory_space<smem>>
    %196 = arith.index_cast %195 : i32 to index
    %c0_83 = arith.constant 0 : index
    %197 = vector.load %arg4[%196, %c0_83] : memref<64x128xf32, #tpu.memory_space<vmem>>, vector<1x128xf32>
    %c5_84 = arith.constant 5 : index
    %198 = arith.index_cast %c2_i32_53 : i32 to index
    %c0_85 = arith.constant 0 : index
    %199 = vector.load %arg7[%c5_84, %198, %c0_85] : memref<6x8x128xf32, #tpu.memory_space<vmem>>, vector<1x1x128xf32>
    %200 = vector.shape_cast %199 : vector<1x1x128xf32> to vector<1x128xf32>
    %201 = vector.shape_cast %197 : vector<1x128xf32> to vector<1x1x128xf32>
    tpu.vector_store %arg7[%c5_84, %198, %c0_85], %201 {strides = array<i32>} : memref<6x8x128xf32, #tpu.memory_space<vmem>>, vector<1x1x128xf32>,
    %c3_i32_86 = arith.constant 3 : i32
    %202 = arith.addi %0, %c3_i32_86 : i32
    %203 = arith.index_cast %202 : i32 to index
    %204 = memref.load %arg1[%203] : memref<16xi32, #tpu.memory_space<smem>>
    %205 = arith.index_cast %204 : i32 to index
    %c0_87 = arith.constant 0 : index
    %206 = vector.load %arg3[%205, %c0_87] : memref<64x128xf32, #tpu.memory_space<vmem>>, vector<1x128xf32>
    %207 = arith.index_cast %c3_i32_86 : i32 to index
    %c0_88 = arith.constant 0 : index
    %208 = vector.load %arg6[%207, %c0_88] : memref<8x128xf32, #tpu.memory_space<vmem>>, vector<1x128xf32>
    tpu.vector_store %arg6[%207, %c0_88], %206 {strides = array<i32>} : memref<8x128xf32, #tpu.memory_space<vmem>>, vector<1x128xf32>,
    %c6_i32_89 = arith.constant 6 : i32
    %209 = arith.muli %202, %c6_i32_89 : i32
    %c0_i32_90 = arith.constant 0 : i32
    %210 = arith.addi %209, %c0_i32_90 : i32
    %211 = arith.index_cast %210 : i32 to index
    %212 = memref.load %arg2[%211] : memref<96xi32, #tpu.memory_space<smem>>
    %213 = arith.index_cast %212 : i32 to index
    %c0_91 = arith.constant 0 : index
    %214 = vector.load %arg4[%213, %c0_91] : memref<64x128xf32, #tpu.memory_space<vmem>>, vector<1x128xf32>
    %c0_92 = arith.constant 0 : index
    %215 = arith.index_cast %c3_i32_86 : i32 to index
    %c0_93 = arith.constant 0 : index
    %216 = vector.load %arg7[%c0_92, %215, %c0_93] : memref<6x8x128xf32, #tpu.memory_space<vmem>>, vector<1x1x128xf32>
    %217 = vector.shape_cast %216 : vector<1x1x128xf32> to vector<1x128xf32>
    %218 = vector.shape_cast %214 : vector<1x128xf32> to vector<1x1x128xf32>
    tpu.vector_store %arg7[%c0_92, %215, %c0_93], %218 {strides = array<i32>} : memref<6x8x128xf32, #tpu.memory_space<vmem>>, vector<1x1x128xf32>,
    %c6_i32_94 = arith.constant 6 : i32
    %219 = arith.muli %202, %c6_i32_94 : i32
    %c1_i32_95 = arith.constant 1 : i32
    %220 = arith.addi %219, %c1_i32_95 : i32
    %221 = arith.index_cast %220 : i32 to index
    %222 = memref.load %arg2[%221] : memref<96xi32, #tpu.memory_space<smem>>
    %223 = arith.index_cast %222 : i32 to index
    %c0_96 = arith.constant 0 : index
    %224 = vector.load %arg4[%223, %c0_96] : memref<64x128xf32, #tpu.memory_space<vmem>>, vector<1x128xf32>
    %c1_97 = arith.constant 1 : index
    %225 = arith.index_cast %c3_i32_86 : i32 to index
    %c0_98 = arith.constant 0 : index
    %226 = vector.load %arg7[%c1_97, %225, %c0_98] : memref<6x8x128xf32, #tpu.memory_space<vmem>>, vector<1x1x128xf32>
    %227 = vector.shape_cast %226 : vector<1x1x128xf32> to vector<1x128xf32>
    %228 = vector.shape_cast %224 : vector<1x128xf32> to vector<1x1x128xf32>
    tpu.vector_store %arg7[%c1_97, %225, %c0_98], %228 {strides = array<i32>} : memref<6x8x128xf32, #tpu.memory_space<vmem>>, vector<1x1x128xf32>,
    %c6_i32_99 = arith.constant 6 : i32
    %229 = arith.muli %202, %c6_i32_99 : i32
    %c2_i32_100 = arith.constant 2 : i32
    %230 = arith.addi %229, %c2_i32_100 : i32
    %231 = arith.index_cast %230 : i32 to index
    %232 = memref.load %arg2[%231] : memref<96xi32, #tpu.memory_space<smem>>
    %233 = arith.index_cast %232 : i32 to index
    %c0_101 = arith.constant 0 : index
    %234 = vector.load %arg4[%233, %c0_101] : memref<64x128xf32, #tpu.memory_space<vmem>>, vector<1x128xf32>
    %c2_102 = arith.constant 2 : index
    %235 = arith.index_cast %c3_i32_86 : i32 to index
    %c0_103 = arith.constant 0 : index
    %236 = vector.load %arg7[%c2_102, %235, %c0_103] : memref<6x8x128xf32, #tpu.memory_space<vmem>>, vector<1x1x128xf32>
    %237 = vector.shape_cast %236 : vector<1x1x128xf32> to vector<1x128xf32>
    %238 = vector.shape_cast %234 : vector<1x128xf32> to vector<1x1x128xf32>
    tpu.vector_store %arg7[%c2_102, %235, %c0_103], %238 {strides = array<i32>} : memref<6x8x128xf32, #tpu.memory_space<vmem>>, vector<1x1x128xf32>,
    %c6_i32_104 = arith.constant 6 : i32
    %239 = arith.muli %202, %c6_i32_104 : i32
    %c3_i32_105 = arith.constant 3 : i32
    %240 = arith.addi %239, %c3_i32_105 : i32
    %241 = arith.index_cast %240 : i32 to index
    %242 = memref.load %arg2[%241] : memref<96xi32, #tpu.memory_space<smem>>
    %243 = arith.index_cast %242 : i32 to index
    %c0_106 = arith.constant 0 : index
    %244 = vector.load %arg4[%243, %c0_106] : memref<64x128xf32, #tpu.memory_space<vmem>>, vector<1x128xf32>
    %c3_107 = arith.constant 3 : index
    %245 = arith.index_cast %c3_i32_86 : i32 to index
    %c0_108 = arith.constant 0 : index
    %246 = vector.load %arg7[%c3_107, %245, %c0_108] : memref<6x8x128xf32, #tpu.memory_space<vmem>>, vector<1x1x128xf32>
    %247 = vector.shape_cast %246 : vector<1x1x128xf32> to vector<1x128xf32>
    %248 = vector.shape_cast %244 : vector<1x128xf32> to vector<1x1x128xf32>
    tpu.vector_store %arg7[%c3_107, %245, %c0_108], %248 {strides = array<i32>} : memref<6x8x128xf32, #tpu.memory_space<vmem>>, vector<1x1x128xf32>,
    %c6_i32_109 = arith.constant 6 : i32
    %249 = arith.muli %202, %c6_i32_109 : i32
    %c4_i32_110 = arith.constant 4 : i32
    %250 = arith.addi %249, %c4_i32_110 : i32
    %251 = arith.index_cast %250 : i32 to index
    %252 = memref.load %arg2[%251] : memref<96xi32, #tpu.memory_space<smem>>
    %253 = arith.index_cast %252 : i32 to index
    %c0_111 = arith.constant 0 : index
    %254 = vector.load %arg4[%253, %c0_111] : memref<64x128xf32, #tpu.memory_space<vmem>>, vector<1x128xf32>
    %c4_112 = arith.constant 4 : index
    %255 = arith.index_cast %c3_i32_86 : i32 to index
    %c0_113 = arith.constant 0 : index
    %256 = vector.load %arg7[%c4_112, %255, %c0_113] : memref<6x8x128xf32, #tpu.memory_space<vmem>>, vector<1x1x128xf32>
    %257 = vector.shape_cast %256 : vector<1x1x128xf32> to vector<1x128xf32>
    %258 = vector.shape_cast %254 : vector<1x128xf32> to vector<1x1x128xf32>
    tpu.vector_store %arg7[%c4_112, %255, %c0_113], %258 {strides = array<i32>} : memref<6x8x128xf32, #tpu.memory_space<vmem>>, vector<1x1x128xf32>,
    %c6_i32_114 = arith.constant 6 : i32
    %259 = arith.muli %202, %c6_i32_114 : i32
    %c5_i32_115 = arith.constant 5 : i32
    %260 = arith.addi %259, %c5_i32_115 : i32
    %261 = arith.index_cast %260 : i32 to index
    %262 = memref.load %arg2[%261] : memref<96xi32, #tpu.memory_space<smem>>
    %263 = arith.index_cast %262 : i32 to index
    %c0_116 = arith.constant 0 : index
    %264 = vector.load %arg4[%263, %c0_116] : memref<64x128xf32, #tpu.memory_space<vmem>>, vector<1x128xf32>
    %c5_117 = arith.constant 5 : index
    %265 = arith.index_cast %c3_i32_86 : i32 to index
    %c0_118 = arith.constant 0 : index
    %266 = vector.load %arg7[%c5_117, %265, %c0_118] : memref<6x8x128xf32, #tpu.memory_space<vmem>>, vector<1x1x128xf32>
    %267 = vector.shape_cast %266 : vector<1x1x128xf32> to vector<1x128xf32>
    %268 = vector.shape_cast %264 : vector<1x128xf32> to vector<1x1x128xf32>
    tpu.vector_store %arg7[%c5_117, %265, %c0_118], %268 {strides = array<i32>} : memref<6x8x128xf32, #tpu.memory_space<vmem>>, vector<1x1x128xf32>,
    %c4_i32_119 = arith.constant 4 : i32
    %269 = arith.addi %0, %c4_i32_119 : i32
    %270 = arith.index_cast %269 : i32 to index
    %271 = memref.load %arg1[%270] : memref<16xi32, #tpu.memory_space<smem>>
    %272 = arith.index_cast %271 : i32 to index
    %c0_120 = arith.constant 0 : index
    %273 = vector.load %arg3[%272, %c0_120] : memref<64x128xf32, #tpu.memory_space<vmem>>, vector<1x128xf32>
    %274 = arith.index_cast %c4_i32_119 : i32 to index
    %c0_121 = arith.constant 0 : index
    %275 = vector.load %arg6[%274, %c0_121] : memref<8x128xf32, #tpu.memory_space<vmem>>, vector<1x128xf32>
    tpu.vector_store %arg6[%274, %c0_121], %273 {strides = array<i32>} : memref<8x128xf32, #tpu.memory_space<vmem>>, vector<1x128xf32>,
    %c6_i32_122 = arith.constant 6 : i32
    %276 = arith.muli %269, %c6_i32_122 : i32
    %c0_i32_123 = arith.constant 0 : i32
    %277 = arith.addi %276, %c0_i32_123 : i32
    %278 = arith.index_cast %277 : i32 to index
    %279 = memref.load %arg2[%278] : memref<96xi32, #tpu.memory_space<smem>>
    %280 = arith.index_cast %279 : i32 to index
    %c0_124 = arith.constant 0 : index
    %281 = vector.load %arg4[%280, %c0_124] : memref<64x128xf32, #tpu.memory_space<vmem>>, vector<1x128xf32>
    %c0_125 = arith.constant 0 : index
    %282 = arith.index_cast %c4_i32_119 : i32 to index
    %c0_126 = arith.constant 0 : index
    %283 = vector.load %arg7[%c0_125, %282, %c0_126] : memref<6x8x128xf32, #tpu.memory_space<vmem>>, vector<1x1x128xf32>
    %284 = vector.shape_cast %283 : vector<1x1x128xf32> to vector<1x128xf32>
    %285 = vector.shape_cast %281 : vector<1x128xf32> to vector<1x1x128xf32>
    tpu.vector_store %arg7[%c0_125, %282, %c0_126], %285 {strides = array<i32>} : memref<6x8x128xf32, #tpu.memory_space<vmem>>, vector<1x1x128xf32>,
    %c6_i32_127 = arith.constant 6 : i32
    %286 = arith.muli %269, %c6_i32_127 : i32
    %c1_i32_128 = arith.constant 1 : i32
    %287 = arith.addi %286, %c1_i32_128 : i32
    %288 = arith.index_cast %287 : i32 to index
    %289 = memref.load %arg2[%288] : memref<96xi32, #tpu.memory_space<smem>>
    %290 = arith.index_cast %289 : i32 to index
    %c0_129 = arith.constant 0 : index
    %291 = vector.load %arg4[%290, %c0_129] : memref<64x128xf32, #tpu.memory_space<vmem>>, vector<1x128xf32>
    %c1_130 = arith.constant 1 : index
    %292 = arith.index_cast %c4_i32_119 : i32 to index
    %c0_131 = arith.constant 0 : index
    %293 = vector.load %arg7[%c1_130, %292, %c0_131] : memref<6x8x128xf32, #tpu.memory_space<vmem>>, vector<1x1x128xf32>
    %294 = vector.shape_cast %293 : vector<1x1x128xf32> to vector<1x128xf32>
    %295 = vector.shape_cast %291 : vector<1x128xf32> to vector<1x1x128xf32>
    tpu.vector_store %arg7[%c1_130, %292, %c0_131], %295 {strides = array<i32>} : memref<6x8x128xf32, #tpu.memory_space<vmem>>, vector<1x1x128xf32>,
    %c6_i32_132 = arith.constant 6 : i32
    %296 = arith.muli %269, %c6_i32_132 : i32
    %c2_i32_133 = arith.constant 2 : i32
    %297 = arith.addi %296, %c2_i32_133 : i32
    %298 = arith.index_cast %297 : i32 to index
    %299 = memref.load %arg2[%298] : memref<96xi32, #tpu.memory_space<smem>>
    %300 = arith.index_cast %299 : i32 to index
    %c0_134 = arith.constant 0 : index
    %301 = vector.load %arg4[%300, %c0_134] : memref<64x128xf32, #tpu.memory_space<vmem>>, vector<1x128xf32>
    %c2_135 = arith.constant 2 : index
    %302 = arith.index_cast %c4_i32_119 : i32 to index
    %c0_136 = arith.constant 0 : index
    %303 = vector.load %arg7[%c2_135, %302, %c0_136] : memref<6x8x128xf32, #tpu.memory_space<vmem>>, vector<1x1x128xf32>
    %304 = vector.shape_cast %303 : vector<1x1x128xf32> to vector<1x128xf32>
    %305 = vector.shape_cast %301 : vector<1x128xf32> to vector<1x1x128xf32>
    tpu.vector_store %arg7[%c2_135, %302, %c0_136], %305 {strides = array<i32>} : memref<6x8x128xf32, #tpu.memory_space<vmem>>, vector<1x1x128xf32>,
    %c6_i32_137 = arith.constant 6 : i32
    %306 = arith.muli %269, %c6_i32_137 : i32
    %c3_i32_138 = arith.constant 3 : i32
    %307 = arith.addi %306, %c3_i32_138 : i32
    %308 = arith.index_cast %307 : i32 to index
    %309 = memref.load %arg2[%308] : memref<96xi32, #tpu.memory_space<smem>>
    %310 = arith.index_cast %309 : i32 to index
    %c0_139 = arith.constant 0 : index
    %311 = vector.load %arg4[%310, %c0_139] : memref<64x128xf32, #tpu.memory_space<vmem>>, vector<1x128xf32>
    %c3_140 = arith.constant 3 : index
    %312 = arith.index_cast %c4_i32_119 : i32 to index
    %c0_141 = arith.constant 0 : index
    %313 = vector.load %arg7[%c3_140, %312, %c0_141] : memref<6x8x128xf32, #tpu.memory_space<vmem>>, vector<1x1x128xf32>
    %314 = vector.shape_cast %313 : vector<1x1x128xf32> to vector<1x128xf32>
    %315 = vector.shape_cast %311 : vector<1x128xf32> to vector<1x1x128xf32>
    tpu.vector_store %arg7[%c3_140, %312, %c0_141], %315 {strides = array<i32>} : memref<6x8x128xf32, #tpu.memory_space<vmem>>, vector<1x1x128xf32>,
    %c6_i32_142 = arith.constant 6 : i32
    %316 = arith.muli %269, %c6_i32_142 : i32
    %c4_i32_143 = arith.constant 4 : i32
    %317 = arith.addi %316, %c4_i32_143 : i32
    %318 = arith.index_cast %317 : i32 to index
    %319 = memref.load %arg2[%318] : memref<96xi32, #tpu.memory_space<smem>>
    %320 = arith.index_cast %319 : i32 to index
    %c0_144 = arith.constant 0 : index
    %321 = vector.load %arg4[%320, %c0_144] : memref<64x128xf32, #tpu.memory_space<vmem>>, vector<1x128xf32>
    %c4_145 = arith.constant 4 : index
    %322 = arith.index_cast %c4_i32_119 : i32 to index
    %c0_146 = arith.constant 0 : index
    %323 = vector.load %arg7[%c4_145, %322, %c0_146] : memref<6x8x128xf32, #tpu.memory_space<vmem>>, vector<1x1x128xf32>
    %324 = vector.shape_cast %323 : vector<1x1x128xf32> to vector<1x128xf32>
    %325 = vector.shape_cast %321 : vector<1x128xf32> to vector<1x1x128xf32>
    tpu.vector_store %arg7[%c4_145, %322, %c0_146], %325 {strides = array<i32>} : memref<6x8x128xf32, #tpu.memory_space<vmem>>, vector<1x1x128xf32>,
    %c6_i32_147 = arith.constant 6 : i32
    %326 = arith.muli %269, %c6_i32_147 : i32
    %c5_i32_148 = arith.constant 5 : i32
    %327 = arith.addi %326, %c5_i32_148 : i32
    %328 = arith.index_cast %327 : i32 to index
    %329 = memref.load %arg2[%328] : memref<96xi32, #tpu.memory_space<smem>>
    %330 = arith.index_cast %329 : i32 to index
    %c0_149 = arith.constant 0 : index
    %331 = vector.load %arg4[%330, %c0_149] : memref<64x128xf32, #tpu.memory_space<vmem>>, vector<1x128xf32>
    %c5_150 = arith.constant 5 : index
    %332 = arith.index_cast %c4_i32_119 : i32 to index
    %c0_151 = arith.constant 0 : index
    %333 = vector.load %arg7[%c5_150, %332, %c0_151] : memref<6x8x128xf32, #tpu.memory_space<vmem>>, vector<1x1x128xf32>
    %334 = vector.shape_cast %333 : vector<1x1x128xf32> to vector<1x128xf32>
    %335 = vector.shape_cast %331 : vector<1x128xf32> to vector<1x1x128xf32>
    tpu.vector_store %arg7[%c5_150, %332, %c0_151], %335 {strides = array<i32>} : memref<6x8x128xf32, #tpu.memory_space<vmem>>, vector<1x1x128xf32>,
    %c5_i32_152 = arith.constant 5 : i32
    %336 = arith.addi %0, %c5_i32_152 : i32
    %337 = arith.index_cast %336 : i32 to index
    %338 = memref.load %arg1[%337] : memref<16xi32, #tpu.memory_space<smem>>
    %339 = arith.index_cast %338 : i32 to index
    %c0_153 = arith.constant 0 : index
    %340 = vector.load %arg3[%339, %c0_153] : memref<64x128xf32, #tpu.memory_space<vmem>>, vector<1x128xf32>
    %341 = arith.index_cast %c5_i32_152 : i32 to index
    %c0_154 = arith.constant 0 : index
    %342 = vector.load %arg6[%341, %c0_154] : memref<8x128xf32, #tpu.memory_space<vmem>>, vector<1x128xf32>
    tpu.vector_store %arg6[%341, %c0_154], %340 {strides = array<i32>} : memref<8x128xf32, #tpu.memory_space<vmem>>, vector<1x128xf32>,
    %c6_i32_155 = arith.constant 6 : i32
    %343 = arith.muli %336, %c6_i32_155 : i32
    %c0_i32_156 = arith.constant 0 : i32
    %344 = arith.addi %343, %c0_i32_156 : i32
    %345 = arith.index_cast %344 : i32 to index
    %346 = memref.load %arg2[%345] : memref<96xi32, #tpu.memory_space<smem>>
    %347 = arith.index_cast %346 : i32 to index
    %c0_157 = arith.constant 0 : index
    %348 = vector.load %arg4[%347, %c0_157] : memref<64x128xf32, #tpu.memory_space<vmem>>, vector<1x128xf32>
    %c0_158 = arith.constant 0 : index
    %349 = arith.index_cast %c5_i32_152 : i32 to index
    %c0_159 = arith.constant 0 : index
    %350 = vector.load %arg7[%c0_158, %349, %c0_159] : memref<6x8x128xf32, #tpu.memory_space<vmem>>, vector<1x1x128xf32>
    %351 = vector.shape_cast %350 : vector<1x1x128xf32> to vector<1x128xf32>
    %352 = vector.shape_cast %348 : vector<1x128xf32> to vector<1x1x128xf32>
    tpu.vector_store %arg7[%c0_158, %349, %c0_159], %352 {strides = array<i32>} : memref<6x8x128xf32, #tpu.memory_space<vmem>>, vector<1x1x128xf32>,
    %c6_i32_160 = arith.constant 6 : i32
    %353 = arith.muli %336, %c6_i32_160 : i32
    %c1_i32_161 = arith.constant 1 : i32
    %354 = arith.addi %353, %c1_i32_161 : i32
    %355 = arith.index_cast %354 : i32 to index
    %356 = memref.load %arg2[%355] : memref<96xi32, #tpu.memory_space<smem>>
    %357 = arith.index_cast %356 : i32 to index
    %c0_162 = arith.constant 0 : index
    %358 = vector.load %arg4[%357, %c0_162] : memref<64x128xf32, #tpu.memory_space<vmem>>, vector<1x128xf32>
    %c1_163 = arith.constant 1 : index
    %359 = arith.index_cast %c5_i32_152 : i32 to index
    %c0_164 = arith.constant 0 : index
    %360 = vector.load %arg7[%c1_163, %359, %c0_164] : memref<6x8x128xf32, #tpu.memory_space<vmem>>, vector<1x1x128xf32>
    %361 = vector.shape_cast %360 : vector<1x1x128xf32> to vector<1x128xf32>
    %362 = vector.shape_cast %358 : vector<1x128xf32> to vector<1x1x128xf32>
    tpu.vector_store %arg7[%c1_163, %359, %c0_164], %362 {strides = array<i32>} : memref<6x8x128xf32, #tpu.memory_space<vmem>>, vector<1x1x128xf32>,
    %c6_i32_165 = arith.constant 6 : i32
    %363 = arith.muli %336, %c6_i32_165 : i32
    %c2_i32_166 = arith.constant 2 : i32
    %364 = arith.addi %363, %c2_i32_166 : i32
    %365 = arith.index_cast %364 : i32 to index
    %366 = memref.load %arg2[%365] : memref<96xi32, #tpu.memory_space<smem>>
    %367 = arith.index_cast %366 : i32 to index
    %c0_167 = arith.constant 0 : index
    %368 = vector.load %arg4[%367, %c0_167] : memref<64x128xf32, #tpu.memory_space<vmem>>, vector<1x128xf32>
    %c2_168 = arith.constant 2 : index
    %369 = arith.index_cast %c5_i32_152 : i32 to index
    %c0_169 = arith.constant 0 : index
    %370 = vector.load %arg7[%c2_168, %369, %c0_169] : memref<6x8x128xf32, #tpu.memory_space<vmem>>, vector<1x1x128xf32>
    %371 = vector.shape_cast %370 : vector<1x1x128xf32> to vector<1x128xf32>
    %372 = vector.shape_cast %368 : vector<1x128xf32> to vector<1x1x128xf32>
    tpu.vector_store %arg7[%c2_168, %369, %c0_169], %372 {strides = array<i32>} : memref<6x8x128xf32, #tpu.memory_space<vmem>>, vector<1x1x128xf32>,
    %c6_i32_170 = arith.constant 6 : i32
    %373 = arith.muli %336, %c6_i32_170 : i32
    %c3_i32_171 = arith.constant 3 : i32
    %374 = arith.addi %373, %c3_i32_171 : i32
    %375 = arith.index_cast %374 : i32 to index
    %376 = memref.load %arg2[%375] : memref<96xi32, #tpu.memory_space<smem>>
    %377 = arith.index_cast %376 : i32 to index
    %c0_172 = arith.constant 0 : index
    %378 = vector.load %arg4[%377, %c0_172] : memref<64x128xf32, #tpu.memory_space<vmem>>, vector<1x128xf32>
    %c3_173 = arith.constant 3 : index
    %379 = arith.index_cast %c5_i32_152 : i32 to index
    %c0_174 = arith.constant 0 : index
    %380 = vector.load %arg7[%c3_173, %379, %c0_174] : memref<6x8x128xf32, #tpu.memory_space<vmem>>, vector<1x1x128xf32>
    %381 = vector.shape_cast %380 : vector<1x1x128xf32> to vector<1x128xf32>
    %382 = vector.shape_cast %378 : vector<1x128xf32> to vector<1x1x128xf32>
    tpu.vector_store %arg7[%c3_173, %379, %c0_174], %382 {strides = array<i32>} : memref<6x8x128xf32, #tpu.memory_space<vmem>>, vector<1x1x128xf32>,
    %c6_i32_175 = arith.constant 6 : i32
    %383 = arith.muli %336, %c6_i32_175 : i32
    %c4_i32_176 = arith.constant 4 : i32
    %384 = arith.addi %383, %c4_i32_176 : i32
    %385 = arith.index_cast %384 : i32 to index
    %386 = memref.load %arg2[%385] : memref<96xi32, #tpu.memory_space<smem>>
    %387 = arith.index_cast %386 : i32 to index
    %c0_177 = arith.constant 0 : index
    %388 = vector.load %arg4[%387, %c0_177] : memref<64x128xf32, #tpu.memory_space<vmem>>, vector<1x128xf32>
    %c4_178 = arith.constant 4 : index
    %389 = arith.index_cast %c5_i32_152 : i32 to index
    %c0_179 = arith.constant 0 : index
    %390 = vector.load %arg7[%c4_178, %389, %c0_179] : memref<6x8x128xf32, #tpu.memory_space<vmem>>, vector<1x1x128xf32>
    %391 = vector.shape_cast %390 : vector<1x1x128xf32> to vector<1x128xf32>
    %392 = vector.shape_cast %388 : vector<1x128xf32> to vector<1x1x128xf32>
    tpu.vector_store %arg7[%c4_178, %389, %c0_179], %392 {strides = array<i32>} : memref<6x8x128xf32, #tpu.memory_space<vmem>>, vector<1x1x128xf32>,
    %c6_i32_180 = arith.constant 6 : i32
    %393 = arith.muli %336, %c6_i32_180 : i32
    %c5_i32_181 = arith.constant 5 : i32
    %394 = arith.addi %393, %c5_i32_181 : i32
    %395 = arith.index_cast %394 : i32 to index
    %396 = memref.load %arg2[%395] : memref<96xi32, #tpu.memory_space<smem>>
    %397 = arith.index_cast %396 : i32 to index
    %c0_182 = arith.constant 0 : index
    %398 = vector.load %arg4[%397, %c0_182] : memref<64x128xf32, #tpu.memory_space<vmem>>, vector<1x128xf32>
    %c5_183 = arith.constant 5 : index
    %399 = arith.index_cast %c5_i32_152 : i32 to index
    %c0_184 = arith.constant 0 : index
    %400 = vector.load %arg7[%c5_183, %399, %c0_184] : memref<6x8x128xf32, #tpu.memory_space<vmem>>, vector<1x1x128xf32>
    %401 = vector.shape_cast %400 : vector<1x1x128xf32> to vector<1x128xf32>
    %402 = vector.shape_cast %398 : vector<1x128xf32> to vector<1x1x128xf32>
    tpu.vector_store %arg7[%c5_183, %399, %c0_184], %402 {strides = array<i32>} : memref<6x8x128xf32, #tpu.memory_space<vmem>>, vector<1x1x128xf32>,
    %c6_i32_185 = arith.constant 6 : i32
    %403 = arith.addi %0, %c6_i32_185 : i32
    %404 = arith.index_cast %403 : i32 to index
    %405 = memref.load %arg1[%404] : memref<16xi32, #tpu.memory_space<smem>>
    %406 = arith.index_cast %405 : i32 to index
    %c0_186 = arith.constant 0 : index
    %407 = vector.load %arg3[%406, %c0_186] : memref<64x128xf32, #tpu.memory_space<vmem>>, vector<1x128xf32>
    %408 = arith.index_cast %c6_i32_185 : i32 to index
    %c0_187 = arith.constant 0 : index
    %409 = vector.load %arg6[%408, %c0_187] : memref<8x128xf32, #tpu.memory_space<vmem>>, vector<1x128xf32>
    tpu.vector_store %arg6[%408, %c0_187], %407 {strides = array<i32>} : memref<8x128xf32, #tpu.memory_space<vmem>>, vector<1x128xf32>,
    %c6_i32_188 = arith.constant 6 : i32
    %410 = arith.muli %403, %c6_i32_188 : i32
    %c0_i32_189 = arith.constant 0 : i32
    %411 = arith.addi %410, %c0_i32_189 : i32
    %412 = arith.index_cast %411 : i32 to index
    %413 = memref.load %arg2[%412] : memref<96xi32, #tpu.memory_space<smem>>
    %414 = arith.index_cast %413 : i32 to index
    %c0_190 = arith.constant 0 : index
    %415 = vector.load %arg4[%414, %c0_190] : memref<64x128xf32, #tpu.memory_space<vmem>>, vector<1x128xf32>
    %c0_191 = arith.constant 0 : index
    %416 = arith.index_cast %c6_i32_185 : i32 to index
    %c0_192 = arith.constant 0 : index
    %417 = vector.load %arg7[%c0_191, %416, %c0_192] : memref<6x8x128xf32, #tpu.memory_space<vmem>>, vector<1x1x128xf32>
    %418 = vector.shape_cast %417 : vector<1x1x128xf32> to vector<1x128xf32>
    %419 = vector.shape_cast %415 : vector<1x128xf32> to vector<1x1x128xf32>
    tpu.vector_store %arg7[%c0_191, %416, %c0_192], %419 {strides = array<i32>} : memref<6x8x128xf32, #tpu.memory_space<vmem>>, vector<1x1x128xf32>,
    %c6_i32_193 = arith.constant 6 : i32
    %420 = arith.muli %403, %c6_i32_193 : i32
    %c1_i32_194 = arith.constant 1 : i32
    %421 = arith.addi %420, %c1_i32_194 : i32
    %422 = arith.index_cast %421 : i32 to index
    %423 = memref.load %arg2[%422] : memref<96xi32, #tpu.memory_space<smem>>
    %424 = arith.index_cast %423 : i32 to index
    %c0_195 = arith.constant 0 : index
    %425 = vector.load %arg4[%424, %c0_195] : memref<64x128xf32, #tpu.memory_space<vmem>>, vector<1x128xf32>
    %c1_196 = arith.constant 1 : index
    %426 = arith.index_cast %c6_i32_185 : i32 to index
    %c0_197 = arith.constant 0 : index
    %427 = vector.load %arg7[%c1_196, %426, %c0_197] : memref<6x8x128xf32, #tpu.memory_space<vmem>>, vector<1x1x128xf32>
    %428 = vector.shape_cast %427 : vector<1x1x128xf32> to vector<1x128xf32>
    %429 = vector.shape_cast %425 : vector<1x128xf32> to vector<1x1x128xf32>
    tpu.vector_store %arg7[%c1_196, %426, %c0_197], %429 {strides = array<i32>} : memref<6x8x128xf32, #tpu.memory_space<vmem>>, vector<1x1x128xf32>,
    %c6_i32_198 = arith.constant 6 : i32
    %430 = arith.muli %403, %c6_i32_198 : i32
    %c2_i32_199 = arith.constant 2 : i32
    %431 = arith.addi %430, %c2_i32_199 : i32
    %432 = arith.index_cast %431 : i32 to index
    %433 = memref.load %arg2[%432] : memref<96xi32, #tpu.memory_space<smem>>
    %434 = arith.index_cast %433 : i32 to index
    %c0_200 = arith.constant 0 : index
    %435 = vector.load %arg4[%434, %c0_200] : memref<64x128xf32, #tpu.memory_space<vmem>>, vector<1x128xf32>
    %c2_201 = arith.constant 2 : index
    %436 = arith.index_cast %c6_i32_185 : i32 to index
    %c0_202 = arith.constant 0 : index
    %437 = vector.load %arg7[%c2_201, %436, %c0_202] : memref<6x8x128xf32, #tpu.memory_space<vmem>>, vector<1x1x128xf32>
    %438 = vector.shape_cast %437 : vector<1x1x128xf32> to vector<1x128xf32>
    %439 = vector.shape_cast %435 : vector<1x128xf32> to vector<1x1x128xf32>
    tpu.vector_store %arg7[%c2_201, %436, %c0_202], %439 {strides = array<i32>} : memref<6x8x128xf32, #tpu.memory_space<vmem>>, vector<1x1x128xf32>,
    %c6_i32_203 = arith.constant 6 : i32
    %440 = arith.muli %403, %c6_i32_203 : i32
    %c3_i32_204 = arith.constant 3 : i32
    %441 = arith.addi %440, %c3_i32_204 : i32
    %442 = arith.index_cast %441 : i32 to index
    %443 = memref.load %arg2[%442] : memref<96xi32, #tpu.memory_space<smem>>
    %444 = arith.index_cast %443 : i32 to index
    %c0_205 = arith.constant 0 : index
    %445 = vector.load %arg4[%444, %c0_205] : memref<64x128xf32, #tpu.memory_space<vmem>>, vector<1x128xf32>
    %c3_206 = arith.constant 3 : index
    %446 = arith.index_cast %c6_i32_185 : i32 to index
    %c0_207 = arith.constant 0 : index
    %447 = vector.load %arg7[%c3_206, %446, %c0_207] : memref<6x8x128xf32, #tpu.memory_space<vmem>>, vector<1x1x128xf32>
    %448 = vector.shape_cast %447 : vector<1x1x128xf32> to vector<1x128xf32>
    %449 = vector.shape_cast %445 : vector<1x128xf32> to vector<1x1x128xf32>
    tpu.vector_store %arg7[%c3_206, %446, %c0_207], %449 {strides = array<i32>} : memref<6x8x128xf32, #tpu.memory_space<vmem>>, vector<1x1x128xf32>,
    %c6_i32_208 = arith.constant 6 : i32
    %450 = arith.muli %403, %c6_i32_208 : i32
    %c4_i32_209 = arith.constant 4 : i32
    %451 = arith.addi %450, %c4_i32_209 : i32
    %452 = arith.index_cast %451 : i32 to index
    %453 = memref.load %arg2[%452] : memref<96xi32, #tpu.memory_space<smem>>
    %454 = arith.index_cast %453 : i32 to index
    %c0_210 = arith.constant 0 : index
    %455 = vector.load %arg4[%454, %c0_210] : memref<64x128xf32, #tpu.memory_space<vmem>>, vector<1x128xf32>
    %c4_211 = arith.constant 4 : index
    %456 = arith.index_cast %c6_i32_185 : i32 to index
    %c0_212 = arith.constant 0 : index
    %457 = vector.load %arg7[%c4_211, %456, %c0_212] : memref<6x8x128xf32, #tpu.memory_space<vmem>>, vector<1x1x128xf32>
    %458 = vector.shape_cast %457 : vector<1x1x128xf32> to vector<1x128xf32>
    %459 = vector.shape_cast %455 : vector<1x128xf32> to vector<1x1x128xf32>
    tpu.vector_store %arg7[%c4_211, %456, %c0_212], %459 {strides = array<i32>} : memref<6x8x128xf32, #tpu.memory_space<vmem>>, vector<1x1x128xf32>,
    %c6_i32_213 = arith.constant 6 : i32
    %460 = arith.muli %403, %c6_i32_213 : i32
    %c5_i32_214 = arith.constant 5 : i32
    %461 = arith.addi %460, %c5_i32_214 : i32
    %462 = arith.index_cast %461 : i32 to index
    %463 = memref.load %arg2[%462] : memref<96xi32, #tpu.memory_space<smem>>
    %464 = arith.index_cast %463 : i32 to index
    %c0_215 = arith.constant 0 : index
    %465 = vector.load %arg4[%464, %c0_215] : memref<64x128xf32, #tpu.memory_space<vmem>>, vector<1x128xf32>
    %c5_216 = arith.constant 5 : index
    %466 = arith.index_cast %c6_i32_185 : i32 to index
    %c0_217 = arith.constant 0 : index
    %467 = vector.load %arg7[%c5_216, %466, %c0_217] : memref<6x8x128xf32, #tpu.memory_space<vmem>>, vector<1x1x128xf32>
    %468 = vector.shape_cast %467 : vector<1x1x128xf32> to vector<1x128xf32>
    %469 = vector.shape_cast %465 : vector<1x128xf32> to vector<1x1x128xf32>
    tpu.vector_store %arg7[%c5_216, %466, %c0_217], %469 {strides = array<i32>} : memref<6x8x128xf32, #tpu.memory_space<vmem>>, vector<1x1x128xf32>,
    %c7_i32 = arith.constant 7 : i32
    %470 = arith.addi %0, %c7_i32 : i32
    %471 = arith.index_cast %470 : i32 to index
    %472 = memref.load %arg1[%471] : memref<16xi32, #tpu.memory_space<smem>>
    %473 = arith.index_cast %472 : i32 to index
    %c0_218 = arith.constant 0 : index
    %474 = vector.load %arg3[%473, %c0_218] : memref<64x128xf32, #tpu.memory_space<vmem>>, vector<1x128xf32>
    %475 = arith.index_cast %c7_i32 : i32 to index
    %c0_219 = arith.constant 0 : index
    %476 = vector.load %arg6[%475, %c0_219] : memref<8x128xf32, #tpu.memory_space<vmem>>, vector<1x128xf32>
    tpu.vector_store %arg6[%475, %c0_219], %474 {strides = array<i32>} : memref<8x128xf32, #tpu.memory_space<vmem>>, vector<1x128xf32>,
    %c6_i32_220 = arith.constant 6 : i32
    %477 = arith.muli %470, %c6_i32_220 : i32
    %c0_i32_221 = arith.constant 0 : i32
    %478 = arith.addi %477, %c0_i32_221 : i32
    %479 = arith.index_cast %478 : i32 to index
    %480 = memref.load %arg2[%479] : memref<96xi32, #tpu.memory_space<smem>>
    %481 = arith.index_cast %480 : i32 to index
    %c0_222 = arith.constant 0 : index
    %482 = vector.load %arg4[%481, %c0_222] : memref<64x128xf32, #tpu.memory_space<vmem>>, vector<1x128xf32>
    %c0_223 = arith.constant 0 : index
    %483 = arith.index_cast %c7_i32 : i32 to index
    %c0_224 = arith.constant 0 : index
    %484 = vector.load %arg7[%c0_223, %483, %c0_224] : memref<6x8x128xf32, #tpu.memory_space<vmem>>, vector<1x1x128xf32>
    %485 = vector.shape_cast %484 : vector<1x1x128xf32> to vector<1x128xf32>
    %486 = vector.shape_cast %482 : vector<1x128xf32> to vector<1x1x128xf32>
    tpu.vector_store %arg7[%c0_223, %483, %c0_224], %486 {strides = array<i32>} : memref<6x8x128xf32, #tpu.memory_space<vmem>>, vector<1x1x128xf32>,
    %c6_i32_225 = arith.constant 6 : i32
    %487 = arith.muli %470, %c6_i32_225 : i32
    %c1_i32_226 = arith.constant 1 : i32
    %488 = arith.addi %487, %c1_i32_226 : i32
    %489 = arith.index_cast %488 : i32 to index
    %490 = memref.load %arg2[%489] : memref<96xi32, #tpu.memory_space<smem>>
    %491 = arith.index_cast %490 : i32 to index
    %c0_227 = arith.constant 0 : index
    %492 = vector.load %arg4[%491, %c0_227] : memref<64x128xf32, #tpu.memory_space<vmem>>, vector<1x128xf32>
    %c1_228 = arith.constant 1 : index
    %493 = arith.index_cast %c7_i32 : i32 to index
    %c0_229 = arith.constant 0 : index
    %494 = vector.load %arg7[%c1_228, %493, %c0_229] : memref<6x8x128xf32, #tpu.memory_space<vmem>>, vector<1x1x128xf32>
    %495 = vector.shape_cast %494 : vector<1x1x128xf32> to vector<1x128xf32>
    %496 = vector.shape_cast %492 : vector<1x128xf32> to vector<1x1x128xf32>
    tpu.vector_store %arg7[%c1_228, %493, %c0_229], %496 {strides = array<i32>} : memref<6x8x128xf32, #tpu.memory_space<vmem>>, vector<1x1x128xf32>,
    %c6_i32_230 = arith.constant 6 : i32
    %497 = arith.muli %470, %c6_i32_230 : i32
    %c2_i32_231 = arith.constant 2 : i32
    %498 = arith.addi %497, %c2_i32_231 : i32
    %499 = arith.index_cast %498 : i32 to index
    %500 = memref.load %arg2[%499] : memref<96xi32, #tpu.memory_space<smem>>
    %501 = arith.index_cast %500 : i32 to index
    %c0_232 = arith.constant 0 : index
    %502 = vector.load %arg4[%501, %c0_232] : memref<64x128xf32, #tpu.memory_space<vmem>>, vector<1x128xf32>
    %c2_233 = arith.constant 2 : index
    %503 = arith.index_cast %c7_i32 : i32 to index
    %c0_234 = arith.constant 0 : index
    %504 = vector.load %arg7[%c2_233, %503, %c0_234] : memref<6x8x128xf32, #tpu.memory_space<vmem>>, vector<1x1x128xf32>
    %505 = vector.shape_cast %504 : vector<1x1x128xf32> to vector<1x128xf32>
    %506 = vector.shape_cast %502 : vector<1x128xf32> to vector<1x1x128xf32>
    tpu.vector_store %arg7[%c2_233, %503, %c0_234], %506 {strides = array<i32>} : memref<6x8x128xf32, #tpu.memory_space<vmem>>, vector<1x1x128xf32>,
    %c6_i32_235 = arith.constant 6 : i32
    %507 = arith.muli %470, %c6_i32_235 : i32
    %c3_i32_236 = arith.constant 3 : i32
    %508 = arith.addi %507, %c3_i32_236 : i32
    %509 = arith.index_cast %508 : i32 to index
    %510 = memref.load %arg2[%509] : memref<96xi32, #tpu.memory_space<smem>>
    %511 = arith.index_cast %510 : i32 to index
    %c0_237 = arith.constant 0 : index
    %512 = vector.load %arg4[%511, %c0_237] : memref<64x128xf32, #tpu.memory_space<vmem>>, vector<1x128xf32>
    %c3_238 = arith.constant 3 : index
    %513 = arith.index_cast %c7_i32 : i32 to index
    %c0_239 = arith.constant 0 : index
    %514 = vector.load %arg7[%c3_238, %513, %c0_239] : memref<6x8x128xf32, #tpu.memory_space<vmem>>, vector<1x1x128xf32>
    %515 = vector.shape_cast %514 : vector<1x1x128xf32> to vector<1x128xf32>
    %516 = vector.shape_cast %512 : vector<1x128xf32> to vector<1x1x128xf32>
    tpu.vector_store %arg7[%c3_238, %513, %c0_239], %516 {strides = array<i32>} : memref<6x8x128xf32, #tpu.memory_space<vmem>>, vector<1x1x128xf32>,
    %c6_i32_240 = arith.constant 6 : i32
    %517 = arith.muli %470, %c6_i32_240 : i32
    %c4_i32_241 = arith.constant 4 : i32
    %518 = arith.addi %517, %c4_i32_241 : i32
    %519 = arith.index_cast %518 : i32 to index
    %520 = memref.load %arg2[%519] : memref<96xi32, #tpu.memory_space<smem>>
    %521 = arith.index_cast %520 : i32 to index
    %c0_242 = arith.constant 0 : index
    %522 = vector.load %arg4[%521, %c0_242] : memref<64x128xf32, #tpu.memory_space<vmem>>, vector<1x128xf32>
    %c4_243 = arith.constant 4 : index
    %523 = arith.index_cast %c7_i32 : i32 to index
    %c0_244 = arith.constant 0 : index
    %524 = vector.load %arg7[%c4_243, %523, %c0_244] : memref<6x8x128xf32, #tpu.memory_space<vmem>>, vector<1x1x128xf32>
    %525 = vector.shape_cast %524 : vector<1x1x128xf32> to vector<1x128xf32>
    %526 = vector.shape_cast %522 : vector<1x128xf32> to vector<1x1x128xf32>
    tpu.vector_store %arg7[%c4_243, %523, %c0_244], %526 {strides = array<i32>} : memref<6x8x128xf32, #tpu.memory_space<vmem>>, vector<1x1x128xf32>,
    %c6_i32_245 = arith.constant 6 : i32
    %527 = arith.muli %470, %c6_i32_245 : i32
    %c5_i32_246 = arith.constant 5 : i32
    %528 = arith.addi %527, %c5_i32_246 : i32
    %529 = arith.index_cast %528 : i32 to index
    %530 = memref.load %arg2[%529] : memref<96xi32, #tpu.memory_space<smem>>
    %531 = arith.index_cast %530 : i32 to index
    %c0_247 = arith.constant 0 : index
    %532 = vector.load %arg4[%531, %c0_247] : memref<64x128xf32, #tpu.memory_space<vmem>>, vector<1x128xf32>
    %c5_248 = arith.constant 5 : index
    %533 = arith.index_cast %c7_i32 : i32 to index
    %c0_249 = arith.constant 0 : index
    %534 = vector.load %arg7[%c5_248, %533, %c0_249] : memref<6x8x128xf32, #tpu.memory_space<vmem>>, vector<1x1x128xf32>
    %535 = vector.shape_cast %534 : vector<1x1x128xf32> to vector<1x128xf32>
    %536 = vector.shape_cast %532 : vector<1x128xf32> to vector<1x1x128xf32>
    tpu.vector_store %arg7[%c5_248, %533, %c0_249], %536 {strides = array<i32>} : memref<6x8x128xf32, #tpu.memory_space<vmem>>, vector<1x1x128xf32>,
    %c8_i32_250 = arith.constant 8 : i32
    %c0_251 = arith.constant 0 : index
    %c0_252 = arith.constant 0 : index
    %537 = vector.load %arg6[%c0_251, %c0_252] : memref<8x128xf32, #tpu.memory_space<vmem>>, vector<8x128xf32>
    %c0_253 = arith.constant 0 : index
    %c0_254 = arith.constant 0 : index
    %c0_255 = arith.constant 0 : index
    %538 = vector.load %arg7[%c0_253, %c0_254, %c0_255] : memref<6x8x128xf32, #tpu.memory_space<vmem>>, vector<1x8x128xf32>
    %539 = vector.shape_cast %538 : vector<1x8x128xf32> to vector<8x128xf32>
    %540 = arith.mulf %539, %537 : vector<8x128xf32>
    %cst = arith.constant dense<0.000000e+00> : vector<8xf32>
    %541 = vector.multi_reduction <add>, %540, %cst [1] : vector<8x128xf32> to vector<8xf32>
    %542 = vector.shape_cast %541 : vector<8xf32> to vector<8x1xf32>
    %c1_256 = arith.constant 1 : index
    %c0_257 = arith.constant 0 : index
    %c0_258 = arith.constant 0 : index
    %543 = vector.load %arg7[%c1_256, %c0_257, %c0_258] : memref<6x8x128xf32, #tpu.memory_space<vmem>>, vector<1x8x128xf32>
    %544 = vector.shape_cast %543 : vector<1x8x128xf32> to vector<8x128xf32>
    %545 = arith.mulf %544, %537 : vector<8x128xf32>
    %cst_259 = arith.constant dense<0.000000e+00> : vector<8xf32>
    %546 = vector.multi_reduction <add>, %545, %cst_259 [1] : vector<8x128xf32> to vector<8xf32>
    %547 = vector.shape_cast %546 : vector<8xf32> to vector<8x1xf32>
    %c2_260 = arith.constant 2 : index
    %c0_261 = arith.constant 0 : index
    %c0_262 = arith.constant 0 : index
    %548 = vector.load %arg7[%c2_260, %c0_261, %c0_262] : memref<6x8x128xf32, #tpu.memory_space<vmem>>, vector<1x8x128xf32>
    %549 = vector.shape_cast %548 : vector<1x8x128xf32> to vector<8x128xf32>
    %550 = arith.mulf %549, %537 : vector<8x128xf32>
    %cst_263 = arith.constant dense<0.000000e+00> : vector<8xf32>
    %551 = vector.multi_reduction <add>, %550, %cst_263 [1] : vector<8x128xf32> to vector<8xf32>
    %552 = vector.shape_cast %551 : vector<8xf32> to vector<8x1xf32>
    %c3_264 = arith.constant 3 : index
    %c0_265 = arith.constant 0 : index
    %c0_266 = arith.constant 0 : index
    %553 = vector.load %arg7[%c3_264, %c0_265, %c0_266] : memref<6x8x128xf32, #tpu.memory_space<vmem>>, vector<1x8x128xf32>
    %554 = vector.shape_cast %553 : vector<1x8x128xf32> to vector<8x128xf32>
    %555 = arith.mulf %554, %537 : vector<8x128xf32>
    %cst_267 = arith.constant dense<0.000000e+00> : vector<8xf32>
    %556 = vector.multi_reduction <add>, %555, %cst_267 [1] : vector<8x128xf32> to vector<8xf32>
    %557 = vector.shape_cast %556 : vector<8xf32> to vector<8x1xf32>
    %c4_268 = arith.constant 4 : index
    %c0_269 = arith.constant 0 : index
    %c0_270 = arith.constant 0 : index
    %558 = vector.load %arg7[%c4_268, %c0_269, %c0_270] : memref<6x8x128xf32, #tpu.memory_space<vmem>>, vector<1x8x128xf32>
    %559 = vector.shape_cast %558 : vector<1x8x128xf32> to vector<8x128xf32>
    %560 = arith.mulf %559, %537 : vector<8x128xf32>
    %cst_271 = arith.constant dense<0.000000e+00> : vector<8xf32>
    %561 = vector.multi_reduction <add>, %560, %cst_271 [1] : vector<8x128xf32> to vector<8xf32>
    %562 = vector.shape_cast %561 : vector<8xf32> to vector<8x1xf32>
    %c5_272 = arith.constant 5 : index
    %c0_273 = arith.constant 0 : index
    %c0_274 = arith.constant 0 : index
    %563 = vector.load %arg7[%c5_272, %c0_273, %c0_274] : memref<6x8x128xf32, #tpu.memory_space<vmem>>, vector<1x8x128xf32>
    %564 = vector.shape_cast %563 : vector<1x8x128xf32> to vector<8x128xf32>
    %565 = arith.mulf %564, %537 : vector<8x128xf32>
    %cst_275 = arith.constant dense<0.000000e+00> : vector<8xf32>
    %566 = vector.multi_reduction <add>, %565, %cst_275 [1] : vector<8x128xf32> to vector<8xf32>
    %567 = vector.shape_cast %566 : vector<8xf32> to vector<8x1xf32>
    %568 = tpu.concatenate %542, %547, %552, %557, %562, %567 in 1 : vector<8x1xf32>, vector<8x1xf32>, vector<8x1xf32>, vector<8x1xf32>, vector<8x1xf32>, vector<8x1xf32> -> vector<8x6xf32>
    %cst_276 = arith.constant 0.000000e+00 : f32
    %569 = vector.broadcast %cst_276 : f32 to vector<8x122xf32>
    %570 = tpu.concatenate %568, %569 in 1 : vector<8x6xf32>, vector<8x122xf32> -> vector<8x128xf32>
    %c0_277 = arith.constant 0 : index
    %c0_278 = arith.constant 0 : index
    %571 = vector.load %arg5[%c0_277, %c0_278] : memref<8x128xf32, #tpu.memory_space<vmem>>, vector<8x128xf32>
    tpu.vector_store %arg5[%c0_277, %c0_278], %570 {strides = array<i32>} : memref<8x128xf32, #tpu.memory_space<vmem>>, vector<8x128xf32>,
    return
  }
  func.func @transform_0(%arg0: i32, %arg1: memref<16xi32, #tpu.memory_space<smem>>, %arg2: memref<96xi32, #tpu.memory_space<smem>>) -> (i32, i32) {
    %c0_i32 = arith.constant 0 : i32
    %c0_i32_0 = arith.constant 0 : i32
    %c0_i32_1 = arith.constant 0 : i32
    return %c0_i32, %c0_i32_0 : i32, i32
  }
  func.func @transform_1(%arg0: i32, %arg1: memref<16xi32, #tpu.memory_space<smem>>, %arg2: memref<96xi32, #tpu.memory_space<smem>>) -> (i32, i32) {
    %c0_i32 = arith.constant 0 : i32
    %c0_i32_0 = arith.constant 0 : i32
    %c0_i32_1 = arith.constant 0 : i32
    return %c0_i32, %c0_i32_0 : i32, i32
  }
  func.func @transform_2(%arg0: i32, %arg1: memref<16xi32, #tpu.memory_space<smem>>, %arg2: memref<96xi32, #tpu.memory_space<smem>>) -> (i32, i32) {
    %c0_i32 = arith.constant 0 : i32
    %c0_i32_0 = arith.constant 0 : i32
    return %arg0, %c0_i32 : i32, i32
  }
}

</mosaic_0001>

<llo_original>
// kernel: sg_forward.1
$region0: #{sg_forward.1}
  #allocation0 [shape = 'u32[]', space=smem, size = 0x4, offset = 0x4, fixed_abs, tag = 'smem constant byte address 0x4 - core index']
  #allocation1 [shape = 'u32[72,128]{1,0:T(1,128)}', space=vmem, size = 0x9000, scoped, tag = 'internal scratch']
  #allocation2 [shape = 'f32[8,128]{1,0:T(8,128)}', space=vmem, size = 0x1000, scoped, tag = 'scratch operand']
  #allocation3 [shape = 'f32[6,8,128]{2,1,0:T(8,128)}', space=vmem, size = 0x6000, scoped, tag = 'scratch operand']
  #allocation4 [shape = 's32[1]{0}', space=sflag, size = 0x4, scoped, tag = 'scoped memory for sg_forward.1']
  #allocation5 [shape = 'u8[512]{0}', space=smem, size = 0x200, scoped, tag = 'prefetched SMEM operand 0']
  #allocation6 [shape = 'u8[512]{0}', space=smem, size = 0x200, scoped, tag = 'prefetched SMEM operand 1']
  %s0 = inlined_call_operand.vmem [shape: s32[16], index: 0, kind: input, shape index: {}]
  %s1 = inlined_call_operand.vmem [shape: s32[96], index: 1, kind: input, shape index: {}]
  %s2 = inlined_call_operand.hbm [shape: f32[64,128], index: 2, kind: input, shape index: {}]
  %s3 = inlined_call_operand.hbm [shape: f32[64,128], index: 3, kind: input, shape index: {}]
  %s4 = inlined_call_operand.vmem [shape: f32[16,128], index: 4, kind: output, shape index: {}]
  %s5 = sld [smem:[#allocation0]]
  $region49: #{sg_forward.1} parent=0
    _
  %s7 = ssub.s32 1, %s5
  %s8 = scalar_select 0, %s7, %s5
  %s10 = sshll.u32 %s0, 4
  %s11 = int_to_ptr.vmem [resolvable:$true] %s10
  %13 = dma.vmem_to_smem %s11, 16, [#allocation5], [#allocation4]
  %s15 = sshll.u32 %s1, 4
  %s16 = int_to_ptr.vmem [resolvable:$true] %s15
  %18 = dma.vmem_to_smem %s16, 16, [#allocation6], [#allocation4]
  %20 = dma.done [#allocation4], 32
  %21 = sfence
  $region1: #{sg_forward.1} parent=0
    #allocation7 [shape = 'u8[32768]{0}', space=vmem, size = 0x8000, scoped, tag = 'input window, operand 2, single buffered']
    #allocation8 [shape = 's32[2]{0}', space=sflag, size = 0x8, scoped, tag = 'scoped memory for sg_forward.1']
    #allocation9 [shape = 'u8[32768]{0}', space=vmem, size = 0x8000, scoped, tag = 'input window, operand 3, single buffered']
    #allocation10 [shape = 's32[1]{0}', space=sflag, size = 0x4, scoped, tag = 'scoped memory for sg_forward.1']
    %22 = vsyncpa [#allocation8], 0
    %23 = vsyncpa [#allocation10], 0
    loop: start=0, step=1, limit=4
    $region2: #{sg_forward.1} parent=1 // loop_pre_header
      _
    $region3: #{sg_forward.1} parent=1 // loop_header
      %s25 = sphi 0, %s29
      %p26 = scmp.ge.s32.totalorder %s25, 4
      %s33 = sphi 0, %s33
      %s35 = sphi 0, %s33
      %s36 = sphi 0, %s35
      %s50 = sphi 0, %s36
      %s54 = sphi 0, %s54
      %s56 = sphi 0, %s54
      %s57 = sphi 0, %s56
      %s71 = sphi 0, %s57
      %s77 = sphi 0, %s79
      %s80 = sphi 0, %s77
      %s81 = sphi 0, %s80
      %s97 = sphi 0, %s81
    $region4: #{sg_forward.1} parent=1 // loop_header_branch
      %28 = sbr.rel (%p26) target = $region8
    $region5: #{sg_forward.1} parent=1 // loop_body
      %s30 = ssub.s32 %s25, 1
      %s31 = ssub.s32 %s25, 2
      %s32 = sadd.s32 %s25, 1
      %s34 = sadd.s32 %s33, 1
      %p37 = scmp.eq.s32.totalorder %s25, 1
      %p38 = scmp.ne.s32.totalorder %s33, %s35
      %p39 = scmp.eq.s32.totalorder %s25, 0
      %p40 = por %p38, %p39
      %p41 = scmp.ne.s32.totalorder %s33, %s35
      %p42 = scmp.eq.s32.totalorder %s30, 1
      %p43 = por %p41, %p42
      %p44 = scmp.ne.s32.totalorder %s35, %s36
      %p45 = scmp.eq.s32.totalorder %s30, 0
      %p46 = por %p44, %p45
      %p47 = scmp.ne.s32.totalorder %s35, %s36
      %p48 = scmp.eq.s32.totalorder %s31, 1
      %p49 = por %p47, %p48
      %p51 = scmp.ne.s32.totalorder %s36, %s50
      %p52 = scmp.eq.s32.totalorder %s31, 0
      %p53 = por %p51, %p52
      %s55 = sadd.s32 %s54, 1
      %p58 = scmp.eq.s32.totalorder %s25, 1
      %p59 = scmp.ne.s32.totalorder %s54, %s56
      %p60 = scmp.eq.s32.totalorder %s25, 0
      %p61 = por %p59, %p60
      %p62 = scmp.ne.s32.totalorder %s54, %s56
      %p63 = scmp.eq.s32.totalorder %s30, 1
      %p64 = por %p62, %p63
      %p65 = scmp.ne.s32.totalorder %s56, %s57
      %p66 = scmp.eq.s32.totalorder %s30, 0
      %p67 = por %p65, %p66
      %p68 = scmp.ne.s32.totalorder %s56, %s57
      %p69 = scmp.eq.s32.totalorder %s31, 1
      %p70 = por %p68, %p69
      %p72 = scmp.ne.s32.totalorder %s57, %s71
      %p73 = scmp.eq.s32.totalorder %s31, 0
      %p74 = por %p72, %p73
      %s75 = ssub.s32 %s25, %s32
      %p76 = scmp.eq.s32.totalorder %s75, 0
      %s78 = sadd.s32 %s77, 1
      %s79 = scalar_select %p76, %s77, %s78
      %p82 = pneg %p76
      %p83 = scmp.eq.s32.totalorder %s25, 1
      %p84 = por %p82, %p83
      %p85 = scmp.ne.s32.totalorder %s77, %s80
      %p86 = scmp.eq.s32.totalorder %s25, 0
      %p87 = por %p85, %p86
      %p88 = scmp.ne.s32.totalorder %s77, %s80
      %p89 = scmp.eq.s32.totalorder %s30, 1
      %p90 = por %p88, %p89
      %p91 = scmp.ne.s32.totalorder %s80, %s81
      %p92 = scmp.eq.s32.totalorder %s30, 0
      %p93 = por %p91, %p92
      %p94 = scmp.ne.s32.totalorder %s80, %s81
      %p95 = scmp.eq.s32.totalorder %s31, 1
      %p96 = por %p94, %p95
      %p98 = scmp.ne.s32.totalorder %s81, %s97
      %p99 = scmp.eq.s32.totalorder %s31, 0
      %p100 = por %p98, %p99
      %p101 = scmp.le.s32.totalorder 1, %s25
      %p102 = scmp.lt.s32.totalorder %s25, 3
      %p103 = pnand %p101, %p102
      %p104 = pneg %p103
      // Predicated region
      $region9: #{sg_forward.1} parent=5 // pred_check
        _
      $region10: #{sg_forward.1} parent=5 // pred_check_branch
        %106 = sbr.rel (%p103) target = $region12
      $region11: #{sg_forward.1} parent=5 // pred_region
        %s107 = ssub.s32 %s25, 1
        // Predicated region
        $region13: #{sg_forward.1} parent=11 // pred_check
          %p108 = pneg %p46
        $region14: #{sg_forward.1} parent=11 // pred_check_branch
          %110 = sbr.rel (%p108) target = $region16
        $region15: #{sg_forward.1} parent=11 // pred_region
          %112 = vsyncadd [#allocation8], 0
          %s113 = sshll.u32 %s2, 4
          %s114 = int_to_ptr.hbm [resolvable:$true] %s113
          %s115 = sshll.u32 [#allocation7], 4
          %s116 = int_to_ptr.vmem [resolvable:$true] %s115
          %121 = dma.hbm_to_vmem [thread:$0]  %s114, 1024, %s116, [#allocation8], 128, 128, 8
        $region16: #{sg_forward.1} parent=11 // pred_fallthru
          _
        // Predicated region
        $region17: #{sg_forward.1} parent=11 // pred_check
          %p122 = pneg %p67
        $region18: #{sg_forward.1} parent=11 // pred_check_branch
          %124 = sbr.rel (%p122) target = $region20
        $region19: #{sg_forward.1} parent=11 // pred_region
          %126 = vsyncadd [#allocation10], 0
          %s127 = sshll.u32 %s3, 4
          %s128 = int_to_ptr.hbm [resolvable:$true] %s127
          %s129 = sshll.u32 [#allocation9], 4
          %s130 = int_to_ptr.vmem [resolvable:$true] %s129
          %135 = dma.hbm_to_vmem [thread:$0]  %s128, 1024, %s130, [#allocation10], 128, 128, 8
        $region20: #{sg_forward.1} parent=11 // pred_fallthru
          _
      $region12: #{sg_forward.1} parent=5 // pred_fallthru
        _
      %p136 = scmp.lt.s32.totalorder %s25, 2
      // Predicated region
      $region21: #{sg_forward.1} parent=5 // pred_check
        %p137 = pneg %p136
      $region22: #{sg_forward.1} parent=5 // pred_check_branch
        %139 = sbr.rel (%p137) target = $region24
      $region23: #{sg_forward.1} parent=5 // pred_region
        _
      $region24: #{sg_forward.1} parent=5 // pred_fallthru
        _
      %p140 = scmp.le.s32.totalorder 1, %s25
      %p141 = scmp.lt.s32.totalorder %s25, 3
      %p142 = pnand %p140, %p141
      %p143 = pneg %p142
      // Predicated region
      $region25: #{sg_forward.1} parent=5 // pred_check
        _
      $region26: #{sg_forward.1} parent=5 // pred_check_branch
        %145 = sbr.rel (%p142) target = $region28
      $region27: #{sg_forward.1} parent=5 // pred_region
        %s146 = ssub.s32 %s25, 1
        // Predicated region
        $region29: #{sg_forward.1} parent=27 // pred_check
          %p147 = pneg %p46
        $region30: #{sg_forward.1} parent=27 // pred_check_branch
          %149 = sbr.rel (%p147) target = $region32
        $region31: #{sg_forward.1} parent=27 // pred_region
          %151 = dma.done [#allocation8], 1024
        $region32: #{sg_forward.1} parent=27 // pred_fallthru
          _
        // Predicated region
        $region33: #{sg_forward.1} parent=27 // pred_check
          %p152 = pneg %p67
        $region34: #{sg_forward.1} parent=27 // pred_check_branch
          %154 = sbr.rel (%p152) target = $region36
        $region35: #{sg_forward.1} parent=27 // pred_region
          %156 = dma.done [#allocation10], 1024
        $region36: #{sg_forward.1} parent=27 // pred_fallthru
          _
        %p157 = pneg %p46
        %p158 = pneg %p43
        %p159 = pneg %p67
        %p160 = pneg %p64
        %p161 = pneg %p93
        %p162 = pneg %p90
        %p163 = scmp.lt.s32.totalorder %s30, 1
        %s164 = scalar_select %p163, %s30, 1
        %s165 = smul.addr %s164, 8
        %s166 = scalar_lea.vmem %s4, %s165
        %p167 = scmp.lt.s32.totalorder %s30, 1
        %s168 = scalar_select %p167, %s30, 1
        %s169 = smul.addr %s168, 8
        %s170 = scalar_lea.vmem %s4, %s169
        %s171 = smul.u32 %s30, 8
        %s172 = sld [smem:[#allocation5 + %s171]]
        %s173 = scalar_lea.vmem [#allocation7], %s172
        %v174 = vld [vmem:[%s173] sm:$0x1]
        %175 = vst [vmem:[#allocation2] sm:$0x1] %v174
        %s176 = smul.u32 %s30, 48
        %s177 = sld [smem:[#allocation6 + %s176]]
        %s178 = scalar_lea.vmem [#allocation9], %s177
        %v179 = vld [vmem:[%s178] sm:$0x1]
        %180 = vst [vmem:[#allocation3] sm:$0x1] %v179
        %s181 = sadd.s32 %s176, 1
        %s182 = sld [smem:[#allocation6 + %s181]]
        %s183 = scalar_lea.vmem [#allocation9], %s182
        %v184 = vld [vmem:[%s183] sm:$0x1]
        %s185 = scalar_lea.vmem [#allocation3], 8
        %186 = vst [vmem:[%s185] sm:$0x1] %v184
        %s187 = sadd.s32 %s176, 2
        %s188 = sld [smem:[#allocation6 + %s187]]
        %s189 = scalar_lea.vmem [#allocation9], %s188
        %v190 = vld [vmem:[%s189] sm:$0x1]
        %s191 = scalar_lea.vmem [#allocation3], 16
        %192 = vst [vmem:[%s191] sm:$0x1] %v190
        %s193 = sadd.s32 %s176, 3
        %s194 = sld [smem:[#allocation6 + %s193]]
        %s195 = scalar_lea.vmem [#allocation9], %s194
        %v196 = vld [vmem:[%s195] sm:$0x1]
        %s197 = scalar_lea.vmem [#allocation3], 24
        %198 = vst [vmem:[%s197] sm:$0x1] %v196
        %s199 = sadd.s32 %s176, 4
        %s200 = sld [smem:[#allocation6 + %s199]]
        %s201 = scalar_lea.vmem [#allocation9], %s200
        %v202 = vld [vmem:[%s201] sm:$0x1]
        %s203 = scalar_lea.vmem [#allocation3], 32
        %204 = vst [vmem:[%s203] sm:$0x1] %v202
        %s205 = sadd.s32 %s176, 5
        %s206 = sld [smem:[#allocation6 + %s205]]
        %s207 = scalar_lea.vmem [#allocation9], %s206
        %v208 = vld [vmem:[%s207] sm:$0x1]
        %s209 = scalar_lea.vmem [#allocation3], 40
        %210 = vst [vmem:[%s209] sm:$0x1] %v208
        %s211 = sadd.s32 %s171, 1
        %s212 = sld [smem:[#allocation5 + %s211]]
        %s213 = scalar_lea.vmem [#allocation7], %s212
        %v214 = vld [vmem:[%s213] sm:$0x1]
        %215 = vst [vmem:[#allocation2 + $0x1] sm:$0x1] %v214
        %s216 = smul.u32 %s211, 6
        %s217 = sld [smem:[#allocation6 + %s216]]
        %s218 = scalar_lea.vmem [#allocation9], %s217
        %v219 = vld [vmem:[%s218] sm:$0x1]
        %220 = vst [vmem:[#allocation3 + $0x1] sm:$0x1] %v219
        %s221 = sadd.s32 %s216, 1
        %s222 = sld [smem:[#allocation6 + %s221]]
        %s223 = scalar_lea.vmem [#allocation9], %s222
        %v224 = vld [vmem:[%s223] sm:$0x1]
        %225 = vst [vmem:[%s185 + $0x1] sm:$0x1] %v224
        %s226 = sadd.s32 %s216, 2
        %s227 = sld [smem:[#allocation6 + %s226]]
        %s228 = scalar_lea.vmem [#allocation9], %s227
        %v229 = vld [vmem:[%s228] sm:$0x1]
        %230 = vst [vmem:[%s191 + $0x1] sm:$0x1] %v229
        %s231 = sadd.s32 %s216, 3
        %s232 = sld [smem:[#allocation6 + %s231]]
        %s233 = scalar_lea.vmem [#allocation9], %s232
        %v234 = vld [vmem:[%s233] sm:$0x1]
        %235 = vst [vmem:[%s197 + $0x1] sm:$0x1] %v234
        %s236 = sadd.s32 %s216, 4
        %s237 = sld [smem:[#allocation6 + %s236]]
        %s238 = scalar_lea.vmem [#allocation9], %s237
        %v239 = vld [vmem:[%s238] sm:$0x1]
        %240 = vst [vmem:[%s203 + $0x1] sm:$0x1] %v239
        %s241 = sadd.s32 %s216, 5
        %s242 = sld [smem:[#allocation6 + %s241]]
        %s243 = scalar_lea.vmem [#allocation9], %s242
        %v244 = vld [vmem:[%s243] sm:$0x1]
        %245 = vst [vmem:[%s209 + $0x1] sm:$0x1] %v244
        %s246 = sadd.s32 %s171, 2
        %s247 = sld [smem:[#allocation5 + %s246]]
        %s248 = scalar_lea.vmem [#allocation7], %s247
        %v249 = vld [vmem:[%s248] sm:$0x1]
        %250 = vst [vmem:[#allocation2 + $0x2] sm:$0x1] %v249
        %s251 = smul.u32 %s246, 6
        %s252 = sld [smem:[#allocation6 + %s251]]
        %s253 = scalar_lea.vmem [#allocation9], %s252
        %v254 = vld [vmem:[%s253] sm:$0x1]
        %255 = vst [vmem:[#allocation3 + $0x2] sm:$0x1] %v254
        %s256 = sadd.s32 %s251, 1
        %s257 = sld [smem:[#allocation6 + %s256]]
        %s258 = scalar_lea.vmem [#allocation9], %s257
        %v259 = vld [vmem:[%s258] sm:$0x1]
        %260 = vst [vmem:[%s185 + $0x2] sm:$0x1] %v259
        %s261 = sadd.s32 %s251, 2
        %s262 = sld [smem:[#allocation6 + %s261]]
        %s263 = scalar_lea.vmem [#allocation9], %s262
        %v264 = vld [vmem:[%s263] sm:$0x1]
        %265 = vst [vmem:[%s191 + $0x2] sm:$0x1] %v264
        %s266 = sadd.s32 %s251, 3
        %s267 = sld [smem:[#allocation6 + %s266]]
        %s268 = scalar_lea.vmem [#allocation9], %s267
        %v269 = vld [vmem:[%s268] sm:$0x1]
        %270 = vst [vmem:[%s197 + $0x2] sm:$0x1] %v269
        %s271 = sadd.s32 %s251, 4
        %s272 = sld [smem:[#allocation6 + %s271]]
        %s273 = scalar_lea.vmem [#allocation9], %s272
        %v274 = vld [vmem:[%s273] sm:$0x1]
        %275 = vst [vmem:[%s203 + $0x2] sm:$0x1] %v274
        %s276 = sadd.s32 %s251, 5
        %s277 = sld [smem:[#allocation6 + %s276]]
        %s278 = scalar_lea.vmem [#allocation9], %s277
        %v279 = vld [vmem:[%s278] sm:$0x1]
        %280 = vst [vmem:[%s209 + $0x2] sm:$0x1] %v279
        %s281 = sadd.s32 %s171, 3
        %s282 = sld [smem:[#allocation5 + %s281]]
        %s283 = scalar_lea.vmem [#allocation7], %s282
        %v284 = vld [vmem:[%s283] sm:$0x1]
        %285 = vst [vmem:[#allocation2 + $0x3] sm:$0x1] %v284
        %s286 = smul.u32 %s281, 6
        %s287 = sld [smem:[#allocation6 + %s286]]
        %s288 = scalar_lea.vmem [#allocation9], %s287
        %v289 = vld [vmem:[%s288] sm:$0x1]
        %290 = vst [vmem:[#allocation3 + $0x3] sm:$0x1] %v289
        %s291 = sadd.s32 %s286, 1
        %s292 = sld [smem:[#allocation6 + %s291]]
        %s293 = scalar_lea.vmem [#allocation9], %s292
        %v294 = vld [vmem:[%s293] sm:$0x1]
        %295 = vst [vmem:[%s185 + $0x3] sm:$0x1] %v294
        %s296 = sadd.s32 %s286, 2
        %s297 = sld [smem:[#allocation6 + %s296]]
        %s298 = scalar_lea.vmem [#allocation9], %s297
        %v299 = vld [vmem:[%s298] sm:$0x1]
        %300 = vst [vmem:[%s191 + $0x3] sm:$0x1] %v299
        %s301 = sadd.s32 %s286, 3
        %s302 = sld [smem:[#allocation6 + %s301]]
        %s303 = scalar_lea.vmem [#allocation9], %s302
        %v304 = vld [vmem:[%s303] sm:$0x1]
        %305 = vst [vmem:[%s197 + $0x3] sm:$0x1] %v304
        %s306 = sadd.s32 %s286, 4
        %s307 = sld [smem:[#allocation6 + %s306]]
        %s308 = scalar_lea.vmem [#allocation9], %s307
        %v309 = vld [vmem:[%s308] sm:$0x1]
        %310 = vst [vmem:[%s203 + $0x3] sm:$0x1] %v309
        %s311 = sadd.s32 %s286, 5
        %s312 = sld [smem:[#allocation6 + %s311]]
        %s313 = scalar_lea.vmem [#allocation9], %s312
        %v314 = vld [vmem:[%s313] sm:$0x1]
        %315 = vst [vmem:[%s209 + $0x3] sm:$0x1] %v314
        %s316 = sadd.s32 %s171, 4
        %s317 = sld [smem:[#allocation5 + %s316]]
        %s318 = scalar_lea.vmem [#allocation7], %s317
        %v319 = vld [vmem:[%s318] sm:$0x1]
        %320 = vst [vmem:[#allocation2 + $0x4] sm:$0x1] %v319
        %s321 = smul.u32 %s316, 6
        %s322 = sld [smem:[#allocation6 + %s321]]
        %s323 = scalar_lea.vmem [#allocation9], %s322
        %v324 = vld [vmem:[%s323] sm:$0x1]
        %325 = vst [vmem:[#allocation3 + $0x4] sm:$0x1] %v324
        %s326 = sadd.s32 %s321, 1
        %s327 = sld [smem:[#allocation6 + %s326]]
        %s328 = scalar_lea.vmem [#allocation9], %s327
        %v329 = vld [vmem:[%s328] sm:$0x1]
        %330 = vst [vmem:[%s185 + $0x4] sm:$0x1] %v329
        %s331 = sadd.s32 %s321, 2
        %s332 = sld [smem:[#allocation6 + %s331]]
        %s333 = scalar_lea.vmem [#allocation9], %s332
        %v334 = vld [vmem:[%s333] sm:$0x1]
        %335 = vst [vmem:[%s191 + $0x4] sm:$0x1] %v334
        %s336 = sadd.s32 %s321, 3
        %s337 = sld [smem:[#allocation6 + %s336]]
        %s338 = scalar_lea.vmem [#allocation9], %s337
        %v339 = vld [vmem:[%s338] sm:$0x1]
        %340 = vst [vmem:[%s197 + $0x4] sm:$0x1] %v339
        %s341 = sadd.s32 %s321, 4
        %s342 = sld [smem:[#allocation6 + %s341]]
        %s343 = scalar_lea.vmem [#allocation9], %s342
        %v344 = vld [vmem:[%s343] sm:$0x1]
        %345 = vst [vmem:[%s203 + $0x4] sm:$0x1] %v344
        %s346 = sadd.s32 %s321, 5
        %s347 = sld [smem:[#allocation6 + %s346]]
        %s348 = scalar_lea.vmem [#allocation9], %s347
        %v349 = vld [vmem:[%s348] sm:$0x1]
        %350 = vst [vmem:[%s209 + $0x4] sm:$0x1] %v349
        %s351 = sadd.s32 %s171, 5
        %s352 = sld [smem:[#allocation5 + %s351]]
        %s353 = scalar_lea.vmem [#allocation7], %s352
        %v354 = vld [vmem:[%s353] sm:$0x1]
        %355 = vst [vmem:[#allocation2 + $0x5] sm:$0x1] %v354
        %s356 = smul.u32 %s351, 6
        %s357 = sld [smem:[#allocation6 + %s356]]
        %s358 = scalar_lea.vmem [#allocation9], %s357
        %v359 = vld [vmem:[%s358] sm:$0x1]
        %360 = vst [vmem:[#allocation3 + $0x5] sm:$0x1] %v359
        %s361 = sadd.s32 %s356, 1
        %s362 = sld [smem:[#allocation6 + %s361]]
        %s363 = scalar_lea.vmem [#allocation9], %s362
        %v364 = vld [vmem:[%s363] sm:$0x1]
        %365 = vst [vmem:[%s185 + $0x5] sm:$0x1] %v364
        %s366 = sadd.s32 %s356, 2
        %s367 = sld [smem:[#allocation6 + %s366]]
        %s368 = scalar_lea.vmem [#allocation9], %s367
        %v369 = vld [vmem:[%s368] sm:$0x1]
        %370 = vst [vmem:[%s191 + $0x5] sm:$0x1] %v369
        %s371 = sadd.s32 %s356, 3
        %s372 = sld [smem:[#allocation6 + %s371]]
        %s373 = scalar_lea.vmem [#allocation9], %s372
        %v374 = vld [vmem:[%s373] sm:$0x1]
        %375 = vst [vmem:[%s197 + $0x5] sm:$0x1] %v374
        %s376 = sadd.s32 %s356, 4
        %s377 = sld [smem:[#allocation6 + %s376]]
        %s378 = scalar_lea.vmem [#allocation9], %s377
        %v379 = vld [vmem:[%s378] sm:$0x1]
        %380 = vst [vmem:[%s203 + $0x5] sm:$0x1] %v379
        %s381 = sadd.s32 %s356, 5
        %s382 = sld [smem:[#allocation6 + %s381]]
        %s383 = scalar_lea.vmem [#allocation9], %s382
        %v384 = vld [vmem:[%s383] sm:$0x1]
        %385 = vst [vmem:[%s209 + $0x5] sm:$0x1] %v384
        %s386 = sadd.s32 %s171, 6
        %s387 = sld [smem:[#allocation5 + %s386]]
        %s388 = scalar_lea.vmem [#allocation7], %s387
        %v389 = vld [vmem:[%s388] sm:$0x1]
        %390 = vst [vmem:[#allocation2 + $0x6] sm:$0x1] %v389
        %s391 = smul.u32 %s386, 6
        %s392 = sld [smem:[#allocation6 + %s391]]
        %s393 = scalar_lea.vmem [#allocation9], %s392
        %v394 = vld [vmem:[%s393] sm:$0x1]
        %395 = vst [vmem:[#allocation3 + $0x6] sm:$0x1] %v394
        %s396 = sadd.s32 %s391, 1
        %s397 = sld [smem:[#allocation6 + %s396]]
        %s398 = scalar_lea.vmem [#allocation9], %s397
        %v399 = vld [vmem:[%s398] sm:$0x1]
        %400 = vst [vmem:[%s185 + $0x6] sm:$0x1] %v399
        %s401 = sadd.s32 %s391, 2
        %s402 = sld [smem:[#allocation6 + %s401]]
        %s403 = scalar_lea.vmem [#allocation9], %s402
        %v404 = vld [vmem:[%s403] sm:$0x1]
        %405 = vst [vmem:[%s191 + $0x6] sm:$0x1] %v404
        %s406 = sadd.s32 %s391, 3
        %s407 = sld [smem:[#allocation6 + %s406]]
        %s408 = scalar_lea.vmem [#allocation9], %s407
        %v409 = vld [vmem:[%s408] sm:$0x1]
        %410 = vst [vmem:[%s197 + $0x6] sm:$0x1] %v409
        %s411 = sadd.s32 %s391, 4
        %s412 = sld [smem:[#allocation6 + %s411]]
        %s413 = scalar_lea.vmem [#allocation9], %s412
        %v414 = vld [vmem:[%s413] sm:$0x1]
        %415 = vst [vmem:[%s203 + $0x6] sm:$0x1] %v414
        %s416 = sadd.s32 %s391, 5
        %s417 = sld [smem:[#allocation6 + %s416]]
        %s418 = scalar_lea.vmem [#allocation9], %s417
        %v419 = vld [vmem:[%s418] sm:$0x1]
        %420 = vst [vmem:[%s209 + $0x6] sm:$0x1] %v419
        %s421 = sadd.s32 %s171, 7
        %s422 = sld [smem:[#allocation5 + %s421]]
        %s423 = scalar_lea.vmem [#allocation7], %s422
        %v424 = vld [vmem:[%s423] sm:$0x1]
        %425 = vst [vmem:[#allocation2 + $0x7] sm:$0x1] %v424
        %s426 = smul.u32 %s421, 6
        %s427 = sld [smem:[#allocation6 + %s426]]
        %s428 = scalar_lea.vmem [#allocation9], %s427
        %v429 = vld [vmem:[%s428] sm:$0x1]
        %430 = vst [vmem:[#allocation3 + $0x7] sm:$0x1] %v429
        %s431 = sadd.s32 %s426, 1
        %s432 = sld [smem:[#allocation6 + %s431]]
        %s433 = scalar_lea.vmem [#allocation9], %s432
        %v434 = vld [vmem:[%s433] sm:$0x1]
        %435 = vst [vmem:[%s185 + $0x7] sm:$0x1] %v434
        %s436 = sadd.s32 %s426, 2
        %s437 = sld [smem:[#allocation6 + %s436]]
        %s438 = scalar_lea.vmem [#allocation9], %s437
        %v439 = vld [vmem:[%s438] sm:$0x1]
        %440 = vst [vmem:[%s191 + $0x7] sm:$0x1] %v439
        %s441 = sadd.s32 %s426, 3
        %s442 = sld [smem:[#allocation6 + %s441]]
        %s443 = scalar_lea.vmem [#allocation9], %s442
        %v444 = vld [vmem:[%s443] sm:$0x1]
        %445 = vst [vmem:[%s197 + $0x7] sm:$0x1] %v444
        %s446 = sadd.s32 %s426, 4
        %s447 = sld [smem:[#allocation6 + %s446]]
        %s448 = scalar_lea.vmem [#allocation9], %s447
        %v449 = vld [vmem:[%s448] sm:$0x1]
        %450 = vst [vmem:[%s203 + $0x7] sm:$0x1] %v449
        %s451 = sadd.s32 %s426, 5
        %s452 = sld [smem:[#allocation6 + %s451]]
        %s453 = scalar_lea.vmem [#allocation9], %s452
        %v454 = vld [vmem:[%s453] sm:$0x1]
        %455 = vst [vmem:[%s209 + $0x7] sm:$0x1] %v454
        %v456 = vld [vmem:[#allocation2] sm:$0xff]
        %v457 = vld [vmem:[#allocation3] sm:$0xff]
        %v458 = vmul.f32 %v457, %v456
        %459 = vadd.xlane.f32.xlu0 %v458
        %v460 = vpop.xlane.xlu0 %459
        %v461 = vld [vmem:[%s185] sm:$0xff]
        %v462 = vmul.f32 %v461, %v456
        %463 = vadd.xlane.f32.xlu0 %v462
        %v464 = vpop.xlane.xlu0 %463
        %v465 = vld [vmem:[%s191] sm:$0xff]
        %v466 = vmul.f32 %v465, %v456
        %467 = vadd.xlane.f32.xlu0 %v466
        %v468 = vpop.xlane.xlu0 %467
        %v469 = vld [vmem:[%s197] sm:$0xff]
        %v470 = vmul.f32 %v469, %v456
        %471 = vadd.xlane.f32.xlu0 %v470
        %v472 = vpop.xlane.xlu0 %471
        %v473 = vld [vmem:[%s203] sm:$0xff]
        %v474 = vmul.f32 %v473, %v456
        %475 = vadd.xlane.f32.xlu0 %v474
        %v476 = vpop.xlane.xlu0 %475
        %v477 = vld [vmem:[%s209] sm:$0xff]
        %v478 = vmul.f32 %v477, %v456
        %479 = vadd.xlane.f32.xlu0 %v478
        %v480 = vpop.xlane.xlu0 %479
        %vm481 = vcmask 7168
        %v482 = vsel %vm481, %v460, %v464
        %vm483 = vcmask 15360
        %v484 = vsel %vm483, %v482, %v468
        %vm485 = vcmask 23552
        %v486 = vsel %vm485, %v484, %v472
        %vm487 = vcmask 31744
        %v488 = vsel %vm487, %v486, %v476
        %vm489 = vcmask 39936
        %v490 = vsel %vm489, %v488, %v480
        %vm491 = vcmask 48128
        %v492 = vsel %vm491, %v490, 0.0
        %493 = vst [vmem:[%s170] sm:$0xff] %v492
        %p494 = scmp.lt.s32.totalorder %s30, 1
        %s495 = scalar_select %p494, %s30, 1
        %s496 = smul.addr %s495, 8
        %s497 = scalar_lea.vmem %s4, %s496
        // Predicated region
        $region37: #{sg_forward.1} parent=27 // pred_check
          %p498 = pneg %p90
        $region38: #{sg_forward.1} parent=27 // pred_check_branch
          %500 = sbr.rel (%p498) target = $region40
        $region39: #{sg_forward.1} parent=27 // pred_region
          _
        $region40: #{sg_forward.1} parent=27 // pred_fallthru
          _
      $region28: #{sg_forward.1} parent=5 // pred_fallthru
        _
      %p501 = scmp.le.s32.totalorder 2, %s25
      // Predicated region
      $region41: #{sg_forward.1} parent=5 // pred_check
        %p502 = pneg %p501
      $region42: #{sg_forward.1} parent=5 // pred_check_branch
        %504 = sbr.rel (%p502) target = $region44
      $region43: #{sg_forward.1} parent=5 // pred_region
        %s505 = ssub.s32 %s25, 2
        // Predicated region
        $region45: #{sg_forward.1} parent=43 // pred_check
          %p506 = pneg %p96
        $region46: #{sg_forward.1} parent=43 // pred_check_branch
          %508 = sbr.rel (%p506) target = $region48
        $region47: #{sg_forward.1} parent=43 // pred_region
          %p509 = scmp.lt.s32.totalorder %s31, 1
          %s510 = scalar_select %p509, %s31, 1
          %s511 = smul.addr %s510, 8
          %s512 = scalar_lea.vmem %s4, %s511
        $region48: #{sg_forward.1} parent=43 // pred_fallthru
          _
      $region44: #{sg_forward.1} parent=5 // pred_fallthru
        _
    $region6: #{sg_forward.1} parent=1 // loop_footer
      %s29 = sadd.s32 1, %s25
    $region7: #{sg_forward.1} parent=1 // loop_footer_branch
      %24 = sbr.rel target = $region3
    $region8: #{sg_forward.1} parent=1 // loop_exit
      _
    %513 = vsyncpa [#allocation8], 1
    %s514 = scalar_lea.sflag [#allocation8], 1
    %515 = vsyncpa %s514, 1
    %516 = vsyncpa [#allocation10], 1

</llo_original>
